<compile_context>
chip_gen: v7x
topology: tpu7x:2x2x1
jax: 0.10.0
libtpu: 0.0.40
codegen_flags: <defaults>
</compile_context>

<pallas_src>
import math

import jax
import jax.numpy as jnp
from jax.experimental import pallas as pl
from jax.experimental.pallas import tpu as pltpu

# ----------------------------- sizes (small, consistent with the module) --------------
B = 4            # example batch
NR = 8           # number of reco particles
F_RECO = 5       # 4 reco vars + existence flag
F_AUG = F_RECO + 1            # +1 constant column (embedding bias folded into weights)
H = 16           # regression_hidden_features
N_LATENT = 10    # flow_context_angles
N_HID = 32       # flow_hiddenMLP_LayerDim_angles
N_TRANS = 5      # flow_ntransforms_angles
N_FLOWS = 5      # higgs, thad_b, thad_W, tlep_b, tlep_W
N_CTX = 2 * N_FLOWS + N_LATENT          # 20 fused flow-context width
N_HEAD = 9 + 10 + 2 + N_LATENT          # 31 regression head outputs
N_PART_OUT = 12  # H,b1,b2,thad,b,q1,q2,tlep,b,el,nu,ISR
N_COMP = 4       # E, pt, eta, phi
N_REG = N_PART_OUT * N_COMP             # 48 folded decay-regression columns
N_HEAD_FULL = N_HEAD + N_REG            # 79
NH5 = N_FLOWS * N_HID                   # 160 fused flow hidden width
NMU = 2 * N_TRANS * N_FLOWS             # 50 (mus / log-scales, transform-major)

OUT_W = 128      # lane-dense fused output width
LOGP_OFF = 80    # output lanes 80..84 carry the 5 flow log-probs
BOOST_OFF = 29   # boost E,pz columns in permuted head
REG_OFF = 31     # folded decay-regression columns in permuted head

_LOG_2PI = math.log(2.0 * math.pi)
_PI = math.pi
_TAN_PI_8 = 0.4142135623730950
_PI_4 = 0.7853981633974483


def _gelu(x):
    # tanh-approx GELU (Mosaic-friendly: only tanh / mul / add)
    c = 0.7978845608028654
    return 0.5 * x * (1.0 + jnp.tanh(c * (x + 0.044715 * x * x * x)))


def _atan01(u):
    """atan(u) for u in (0, 1], Cephes-style minimax polynomial (float32 accurate)."""
    big = u > _TAN_PI_8
    x = jnp.where(big, (u - 1.0) / (u + 1.0), u)
    y0 = jnp.where(big, _PI_4, 0.0)
    z = x * x
    p = (((8.05374449538e-2 * z - 1.38776856032e-1) * z
          + 1.99777106478e-1) * z - 3.33329491539e-1) * z * x + x
    return y0 + p


def _eta_to_theta_inkernel(eta):
    """theta = 2*atan(exp(-eta)) built from exp + polynomial atan (no jnp.arctan)."""
    t = jnp.exp(-jnp.abs(eta))          # in (0, 1]
    a = _atan01(t)
    return jnp.where(eta >= 0.0, 2.0 * a, _PI - 2.0 * a)


# ----------------------------- the single fused Pallas kernel -------------------------
def fused_kernel(reco_ref, mask_ref, boost_ref, maskb_ref, xtgt_ref,
                 w_er_ref, w_eb_ref, w12_ref, b12_ref, w_head_ref, b_head_ref,
                 w1ctx_ref, fb_ref, w234_ref, wo2_ref, bo2_ref, pair_ref,
                 out_ref):
    tb = out_ref.shape[0]               # static batch-tile size

    # ---- per-particle embedding + in-kernel masked mean pool (no O(B^2) pool matrix) --
    e_r = _gelu(jnp.dot(reco_ref[...], w_er_ref[...],
                        preferred_element_type=jnp.float32))      # (tb*NR, H)
    e_r = e_r.reshape(tb, NR, H)
    mask = mask_ref[...]                                          # (tb, NR, 1)
    part_sum = jnp.sum(e_r * mask, axis=1)                        # (tb, H)
    n_reco = jnp.sum(mask, axis=1)                                # (tb, 1)

    maskb = maskb_ref[...]                                        # (tb, 1)
    e_b = _gelu(jnp.dot(boost_ref[...], w_eb_ref[...],
                        preferred_element_type=jnp.float32))      # (tb, H)
    counts = jnp.maximum(n_reco + maskb, 1.0)
    pooled = (part_sum + maskb * e_b) * pl.reciprocal(counts, approx=True)

    # ---- conditioning DNN + head (decay regression + scaling pre-folded on host) ------
    h = _gelu(jnp.dot(pooled, w12_ref[0], preferred_element_type=jnp.float32)
              + b12_ref[0:1, :])
    h = _gelu(jnp.dot(h, w12_ref[1], preferred_element_type=jnp.float32)
              + b12_ref[1:2, :])
    # lanes: 0:10 decay eta/phi, 10:20 latent, 20:29 propagator vars, 29:31 boost,
    # 31:79 folded decay regression, 80:85 reserved for log-probs (bias = -log(2*pi))
    cond = jnp.dot(h, w_head_ref[...], preferred_element_type=jnp.float32) \
        + b_head_ref[...]                                         # (tb, 128)

    # ---- flow context (lane-aligned slice at 0): eta -> theta on even lanes < 10 ------
    ctx = cond[:, 0:N_CTX]                                        # (tb, 20)
    col = jax.lax.broadcasted_iota(jnp.int32, ctx.shape, 1)
    is_eta = jnp.logical_and(col < 2 * N_FLOWS, (col % 2) == 0)
    ctx = jnp.where(is_eta, _eta_to_theta_inkernel(ctx), ctx)

    # ---- 5 flow conditioner MLPs as one block-diagonal stack (lane width 160) ---------
    hf = _gelu(jnp.dot(ctx, w1ctx_ref[...], preferred_element_type=jnp.float32)
               + fb_ref[0:1, :])
    hf = _gelu(jnp.dot(hf, w234_ref[0], preferred_element_type=jnp.float32)
               + fb_ref[1:2, :])
    hf = _gelu(jnp.dot(hf, w234_ref[1], preferred_element_type=jnp.float32)
               + fb_ref[2:3, :])
    hf = _gelu(jnp.dot(hf, w234_ref[2], preferred_element_type=jnp.float32)
               + fb_ref[3:4, :])

    mus = jnp.dot(hf, wo2_ref[0], preferred_element_type=jnp.float32) + bo2_ref[0:1, :]
    raw = jnp.dot(hf, wo2_ref[1], preferred_element_type=jnp.float32) + bo2_ref[1:2, :]
    logs = jnp.tanh(raw)                                          # (tb, 50)
    inv = jnp.exp(-logs)                                          # hoisted: 1 EUP dispatch

    # ---- affine conditional flow, log-prob of the theta/phi targets -------------------
    z = xtgt_ref[...]                                             # (tb, 10)
    total_logs = jnp.zeros_like(z)
    for t in range(N_TRANS):
        sl = slice(10 * t, 10 * t + 10)
        z = (z - mus[:, sl]) * inv[:, sl]
        total_logs = total_logs + logs[:, sl]

    v = 0.5 * z * z + total_logs                                  # (tb, 10)
    # pair_ref places -(per-flow sums) at lanes 80..84; -log(2*pi) already in head bias
    out_ref[...] = cond - jnp.dot(v, pair_ref[...], preferred_element_type=jnp.float32)


# ----------------------------- parameters ---------------------------------------------
def init_params(key):
    ks = jax.random.split(key, 24)

    def w(k, shape):
        fan_in = shape[-2]
        return jax.random.normal(k, shape, jnp.float32) / jnp.sqrt(jnp.float32(fan_in))

    def b(k, shape):
        return 0.01 * jax.random.normal(k, shape, jnp.float32)

    p = {
        # conditioning transformer (simplified)
        "W_er": w(ks[0], (F_RECO, H)), "b_er": b(ks[1], (1, H)),
        "W_eb": w(ks[2], (2, H)),      "b_eb": b(ks[3], (1, H)),
        "W1":   w(ks[4], (H, H)),      "b1":   b(ks[5], (1, H)),
        "W2":   w(ks[6], (H, H)),      "b2":   b(ks[7], (1, H)),
        "W_head": w(ks[8], (H, N_HEAD)), "b_head": b(ks[9], (1, N_HEAD)),
        # decay-parton regression
        "W_dec": w(ks[10], (9 + 10 + 2, N_REG)),
        "b_dec": b(ks[11], (1, N_REG)),
        # 5 stacked flows (conditioner MLPs)
        "fW1": w(ks[12], (N_FLOWS, 2 + N_LATENT, N_HID)), "fb1": b(ks[13], (N_FLOWS, 1, N_HID)),
        "fW2": w(ks[14], (N_FLOWS, N_HID, N_HID)),        "fb2": b(ks[15], (N_FLOWS, 1, N_HID)),
        "fW3": w(ks[16], (N_FLOWS, N_HID, N_HID)),        "fb3": b(ks[17], (N_FLOWS, 1, N_HID)),
        "fW4": w(ks[18], (N_FLOWS, N_HID, N_HID)),        "fb4": b(ks[19], (N_FLOWS, 1, N_HID)),
        "fWo": w(ks[20], (N_FLOWS, N_HID, 4 * N_TRANS)),
        "fbo": b(ks[21], (N_FLOWS, 1, 4 * N_TRANS)),
    }
    return p


def pack_params(p, log_mean_parton, log_std_parton):
    """One-time host-side packing: fold decay regression + scaling into the head,
    permute head columns so the flow context is lane-aligned, block-diagonalize the
    5 flow MLPs, fold embedding biases into weight rows, build the pair-sum matrix."""
    f32 = jnp.float32

    # --- fold (x - log_mean)/log_std and W_dec into extra head columns -----------------
    mean4 = jnp.concatenate([jnp.zeros((1,), f32), log_mean_parton])
    std4 = jnp.concatenate([jnp.ones((1,), f32), log_std_parton])
    mean_full = jnp.tile(mean4, N_PART_OUT)[None, :]              # (1, 48)
    std_full = jnp.tile(std4, N_PART_OUT)[None, :]                # (1, 48)
    W_dec_s = p["W_dec"] / std_full
    b_dec_s = (p["b_dec"] - mean_full) / std_full
    W_reg = p["W_head"][:, :21] @ W_dec_s                         # (16, 48)
    b_reg = p["b_head"][:, :21] @ W_dec_s + b_dec_s               # (1, 48)
    W_full = jnp.concatenate([p["W_head"], W_reg], axis=1)        # (16, 79)
    b_full = jnp.concatenate([p["b_head"], b_reg], axis=1)        # (1, 79)

    # --- permute head columns: [decay 10 | latent 10 | props 9 | boost 2 | regression 48]
    perm = (list(range(9, 19)) + list(range(21, 31)) + list(range(0, 9))
            + [19, 20] + list(range(31, N_HEAD_FULL)))
    perm = jnp.asarray(perm, jnp.int32)
    W_head128 = jnp.zeros((H, OUT_W), f32).at[:, :N_HEAD_FULL].set(W_full[:, perm])
    b_head128 = jnp.zeros((1, OUT_W), f32).at[:, :N_HEAD_FULL].set(b_full[:, perm])
    b_head128 = b_head128.at[0, LOGP_OFF:LOGP_OFF + N_FLOWS].set(-_LOG_2PI)

    # --- embedding weights with bias folded as an extra input row ----------------------
    W_er_aug = jnp.concatenate([p["W_er"], p["b_er"]], axis=0)    # (6, 16)
    W_eb_aug = jnp.concatenate([p["W_eb"], p["b_eb"]], axis=0)    # (3, 16)
    W12 = jnp.stack([p["W1"], p["W2"]])                           # (2, 16, 16)
    B12 = jnp.concatenate([p["b1"], p["b2"]], axis=0)             # (2, 16)

    # --- flow layer 1: rows 0:10 theta/phi (flow-paired), rows 10:20 latent ------------
    W1_ctx = jnp.zeros((N_CTX, NH5), f32)
    for f in range(N_FLOWS):
        cs = slice(N_HID * f, N_HID * (f + 1))
        W1_ctx = W1_ctx.at[2 * f:2 * f + 2, cs].set(p["fW1"][f, 0:2, :])
        W1_ctx = W1_ctx.at[2 * N_FLOWS:, cs].set(p["fW1"][f, 2:, :])

    def blockdiag(ws):
        out = jnp.zeros((NH5, NH5), f32)
        for f in range(N_FLOWS):
            out = out.at[N_HID * f:N_HID * (f + 1), N_HID * f:N_HID * (f + 1)].set(ws[f])
        return out

    W234 = jnp.stack([blockdiag(p["fW2"]), blockdiag(p["fW3"]), blockdiag(p["fW4"])])
    FB = jnp.concatenate([p["fb1"].reshape(1, NH5), p["fb2"].reshape(1, NH5),
                          p["fb3"].reshape(1, NH5), p["fb4"].reshape(1, NH5)], axis=0)

    # --- output layer split into mu / log-scale slabs (transform-major, flow pairs) ----
    Wo_mu = jnp.zeros((NH5, NMU), f32)
    Wo_ls = jnp.zeros((NH5, NMU), f32)
    bo_mu = jnp.zeros((1, NMU), f32)
    bo_ls = jnp.zeros((1, NMU), f32)
    for f in range(N_FLOWS):
        rows = slice(N_HID * f, N_HID * (f + 1))
        for t in range(N_TRANS):
            cols = slice(10 * t + 2 * f, 10 * t + 2 * f + 2)
            Wo_mu = Wo_mu.at[rows, cols].set(p["fWo"][f, :, 4 * t:4 * t + 2])
            Wo_ls = Wo_ls.at[rows, cols].set(p["fWo"][f, :, 4 * t + 2:4 * t + 4])
            bo_mu = bo_mu.at[0, cols].set(p["fbo"][f, 0, 4 * t:4 * t + 2])
            bo_ls = bo_ls.at[0, cols].set(p["fbo"][f, 0, 4 * t + 2:4 * t + 4])
    WO2 = jnp.stack([Wo_mu, Wo_ls])                               # (2, 160, 50)
    BO2 = jnp.concatenate([bo_mu, bo_ls], axis=0)                 # (2, 50)

    # --- pair-sum matrix placing the per-flow sums at output lanes LOGP_OFF.. ----------
    PAIR = jnp.zeros((2 * N_FLOWS, OUT_W), f32)
    for f in range(N_FLOWS):
        PAIR = PAIR.at[2 * f, LOGP_OFF + f].set(1.0)
        PAIR = PAIR.at[2 * f + 1, LOGP_OFF + f].set(1.0)

    return {"W_er_aug": W_er_aug, "W_eb_aug": W_eb_aug, "W12": W12, "B12": B12,
            "W_head128": W_head128, "b_head128": b_head128,
            "W1_ctx": W1_ctx, "FB": FB, "W234": W234, "WO2": WO2, "BO2": BO2,
            "PAIR": PAIR}


# ----------------------------- host glue ----------------------------------------------
def _round_up(x, m):
    return ((x + m - 1) // m) * m


def _eta_to_theta_host(x):
    # theta = 2 * atan(exp(-eta)) on column 0 (targets are pure inputs -> host transform)
    return x.at[..., 0].set(2.0 * jnp.arctan(jnp.exp(-x[..., 0])))


def unfolding_flow_forward(packed,
                           logScaled_reco_Spanet, data_boost_reco,
                           mask_recoParticles, mask_boost_reco,
                           higgs_etaPhi_unscaled_CM_target,
                           thad_etaPhi_unscaled_CM_target,
                           tlep_etaPhi_unscaled_CM_target):
    # flow_eval == "normalizing"
    Bc, NRc, Fc = logScaled_reco_Spanet.shape
    TB = 128 if Bc >= 128 else _round_up(Bc, 8)    # batch tile (sublane-aligned)
    B_pad = _round_up(Bc, TB)
    pad = B_pad - Bc

    # reco particles with a constant-1 feature (embedding bias folded into the weights)
    reco_aug = jnp.concatenate(
        [logScaled_reco_Spanet, jnp.ones((Bc, NRc, 1), jnp.float32)], axis=-1)
    reco_flat = jnp.pad(reco_aug.reshape(Bc * NRc, Fc + 1), ((0, pad * NRc), (0, 0)))

    mask3 = jnp.pad(mask_recoParticles.astype(jnp.float32)[..., None],
                    ((0, pad), (0, 0), (0, 0)))                   # (B_pad, NR, 1)
    boost3 = jnp.concatenate([data_boost_reco[:, 0, 0:1], data_boost_reco[:, 0, 3:4],
                              jnp.ones((Bc, 1), jnp.float32)], axis=-1)
    boost3 = jnp.pad(boost3, ((0, pad), (0, 0)))                  # (B_pad, 3)
    maskb = jnp.pad(mask_boost_reco.astype(jnp.float32), ((0, pad), (0, 0)))

    # target-side eta -> theta (pure input transform, done on host as in the reference)
    higgs_t = _eta_to_theta_host(higgs_etaPhi_unscaled_CM_target)   # (B, 1, 2)
    thad_t = _eta_to_theta_host(thad_etaPhi_unscaled_CM_target)     # (B, 2, 2)
    tlep_t = _eta_to_theta_host(tlep_etaPhi_unscaled_CM_target)     # (B, 2, 2)
    xtgt = jnp.concatenate([higgs_t[:, 0], thad_t[:, 0], thad_t[:, 1],
                            tlep_t[:, 0], tlep_t[:, 1]], axis=-1)   # (B, 10)
    xtgt = jnp.pad(xtgt, ((0, pad), (0, 0)))

    # advisory cost estimate (per padded row)
    flops = 2 * B_pad * (NR * F_AUG * H + 3 * H + 2 * H * H + H * OUT_W
                         + N_CTX * NH5 + 3 * NH5 * NH5 + 2 * NH5 * NMU
                         + 2 * N_FLOWS * OUT_W)
    transcendentals = B_pad * (NR * H + 3 * H + 4 * NH5 + N_CTX + 2 * NMU + 1)
    weight_bytes = 4 * (F_AUG * H + 3 * H + 2 * H * H + 2 * H + H * OUT_W + OUT_W
                        + N_CTX * NH5 + 4 * NH5 + 3 * NH5 * NH5 + 2 * NH5 * NMU
                        + 2 * NMU + 2 * N_FLOWS * OUT_W)
    bytes_accessed = weight_bytes + 4 * B_pad * (NR * F_AUG + NR + 3 + 1
                                                 + 2 * N_FLOWS + OUT_W)

    out = pl.pallas_call(
        fused_kernel,
        out_shape=jax.ShapeDtypeStruct((B_pad, OUT_W), jnp.float32),
        grid=(B_pad // TB,),
        in_specs=[
            # per-event data, tiled over the batch grid
            pl.BlockSpec((TB * NR, F_AUG), lambda i: (i, 0)),
            pl.BlockSpec((TB, NR, 1), lambda i: (i, 0, 0)),
            pl.BlockSpec((TB, 3), lambda i: (i, 0)),
            pl.BlockSpec((TB, 1), lambda i: (i, 0)),
            pl.BlockSpec((TB, 2 * N_FLOWS), lambda i: (i, 0)),
            # weights / constants: constant index maps -> fetched once, stay resident
            pl.BlockSpec((F_AUG, H), lambda i: (0, 0)),
            pl.BlockSpec((3, H), lambda i: (0, 0)),
            pl.BlockSpec((2, H, H), lambda i: (0, 0, 0)),
            pl.BlockSpec((2, H), lambda i: (0, 0)),
            pl.BlockSpec((H, OUT_W), lambda i: (0, 0)),
            pl.BlockSpec((1, OUT_W), lambda i: (0, 0)),
            pl.BlockSpec((N_CTX, NH5), lambda i: (0, 0)),
            pl.BlockSpec((4, NH5), lambda i: (0, 0)),
            pl.BlockSpec((3, NH5, NH5), lambda i: (0, 0, 0)),
            pl.BlockSpec((2, NH5, NMU), lambda i: (0, 0, 0)),
            pl.BlockSpec((2, NMU), lambda i: (0, 0)),
            pl.BlockSpec((2 * N_FLOWS, OUT_W), lambda i: (0, 0)),
        ],
        out_specs=pl.BlockSpec((TB, OUT_W), lambda i: (i, 0)),
        compiler_params=pltpu.CompilerParams(
            dimension_semantics=("parallel",),
            vmem_limit_bytes=32 * 1024 * 1024),
        cost_estimate=pl.CostEstimate(flops=flops, transcendentals=transcendentals,
                                      bytes_accessed=bytes_accessed),
    )(reco_flat, mask3, boost3, maskb, xtgt,
      packed["W_er_aug"], packed["W_eb_aug"], packed["W12"], packed["B12"],
      packed["W_head128"], packed["b_head128"],
      packed["W1_ctx"], packed["FB"], packed["W234"], packed["WO2"], packed["BO2"],
      packed["PAIR"])

    out = out[:Bc]
    boost_regressed_Epz_scaled = out[:, BOOST_OFF:BOOST_OFF + 2].reshape(Bc, 1, 2)
    regressed = out[:, REG_OFF:REG_OFF + N_REG].reshape(Bc, N_PART_OUT, N_COMP)
    logp = out[:, LOGP_OFF:LOGP_OFF + N_FLOWS]

    return (regressed, boost_regressed_Epz_scaled,
            logp[:, 0:1], logp[:, 1:2], logp[:, 2:3], logp[:, 3:4], logp[:, 4:5])


# ----------------------------- main -----------------------------------------------------
if __name__ == "__main__":
    key = jax.random.PRNGKey(0)
    k_in = jax.random.split(key, 10)

    logScaled_reco_Spanet = jax.random.normal(k_in[0], (B, NR, F_RECO), jnp.float32)
    data_boost_reco = jax.random.normal(k_in[1], (B, 1, 4), jnp.float32)
    mask_recoParticles = jnp.concatenate(
        [jnp.ones((B, NR - 2), jnp.float32), jnp.zeros((B, 2), jnp.float32)], axis=1)
    mask_boost_reco = jnp.ones((B, 1), jnp.float32)

    higgs_target = 0.5 * jax.random.normal(k_in[2], (B, 1, 2), jnp.float32)
    thad_target = 0.5 * jax.random.normal(k_in[3], (B, 2, 2), jnp.float32)
    tlep_target = 0.5 * jax.random.normal(k_in[4], (B, 2, 2), jnp.float32)

    log_mean_parton = 0.1 * jax.random.normal(k_in[5], (3,), jnp.float32)
    log_std_parton = 0.5 + jnp.abs(jax.random.normal(k_in[6], (3,), jnp.float32))
    # TODO(synk): log_mean/std_boost_parton and *_Hthad only enter the full kinematic
    # decay reconstruction, which is simplified here; they are unused.
    log_mean_boost = 0.1 * jax.random.normal(k_in[7], (2,), jnp.float32)
    log_std_boost = 0.5 + jnp.abs(jax.random.normal(k_in[8], (2,), jnp.float32))
    log_mean_Hthad = 0.1 * jax.random.normal(k_in[9], (3,), jnp.float32)
    log_std_Hthad = 0.5 + jnp.abs(jax.random.normal(k_in[9], (3,), jnp.float32))
    del log_mean_boost, log_std_boost, log_mean_Hthad, log_std_Hthad

    params = init_params(jax.random.PRNGKey(1))
    packed = pack_params(params, log_mean_parton, log_std_parton)   # one-time packing

    forward = jax.jit(unfolding_flow_forward)
    outs = forward(packed,
                   logScaled_reco_Spanet, data_boost_reco,
                   mask_recoParticles, mask_boost_reco,
                   higgs_target, thad_target, tlep_target)
    outs = jax.block_until_ready(outs)

    # sanity on shapes / finiteness
    assert outs[0].shape == (B, N_PART_OUT, N_COMP)
    assert outs[1].shape == (B, 1, 2)
    assert bool(jnp.all(jnp.isfinite(outs[0])))
    assert bool(jnp.all(jnp.isfinite(outs[1])))
    for o in outs[2:]:
        assert o.shape == (B, 1)
        assert bool(jnp.all(jnp.isfinite(o)))
    print("KERNEL_OK")
</pallas_src>

<mosaic_0001>
module attributes {stable_mosaic.version = 11 : i64} {
  func.func @fused_kernel(%arg0: i32, %arg1: memref<64x6xf32, #tpu.memory_space<vmem>>, %arg2: memref<8x8x1xf32, #tpu.memory_space<vmem>>, %arg3: memref<8x3xf32, #tpu.memory_space<vmem>>, %arg4: memref<8x1xf32, #tpu.memory_space<vmem>>, %arg5: memref<8x10xf32, #tpu.memory_space<vmem>>, %arg6: memref<6x16xf32, #tpu.memory_space<vmem>>, %arg7: memref<3x16xf32, #tpu.memory_space<vmem>>, %arg8: memref<2x16x16xf32, #tpu.memory_space<vmem>>, %arg9: memref<2x16xf32, #tpu.memory_space<vmem>>, %arg10: memref<16x128xf32, #tpu.memory_space<vmem>>, %arg11: memref<1x128xf32, #tpu.memory_space<vmem>>, %arg12: memref<20x160xf32, #tpu.memory_space<vmem>>, %arg13: memref<4x160xf32, #tpu.memory_space<vmem>>, %arg14: memref<3x160x160xf32, #tpu.memory_space<vmem>>, %arg15: memref<2x160x50xf32, #tpu.memory_space<vmem>>, %arg16: memref<2x50xf32, #tpu.memory_space<vmem>>, %arg17: memref<10x128xf32, #tpu.memory_space<vmem>>, %arg18: memref<8x128xf32, #tpu.memory_space<vmem>>) attributes {dimension_semantics = [#tpu.dimension_semantics<parallel>], iteration_bounds = array<i64: 1>, scalar_prefetch = 0 : i64, scratch_operands = 0 : i64, tpu.core_type = #tpu.core_type<tc>, window_params = [{transform_indices = @transform_0, window_bounds = array<i64: 64, 6>}, {transform_indices = @transform_1, window_bounds = array<i64: 8, 8, 1>}, {transform_indices = @transform_2, window_bounds = array<i64: 8, 3>}, {transform_indices = @transform_3, window_bounds = array<i64: 8, 1>}, {transform_indices = @transform_4, window_bounds = array<i64: 8, 10>}, {pipeline_mode = #tpu.pipeline_mode<synchronous>, transform_indices = @transform_5, window_bounds = array<i64: 6, 16>}, {pipeline_mode = #tpu.pipeline_mode<synchronous>, transform_indices = @transform_6, window_bounds = array<i64: 3, 16>}, {pipeline_mode = #tpu.pipeline_mode<synchronous>, transform_indices = @transform_7, window_bounds = array<i64: 2, 16, 16>}, {pipeline_mode = #tpu.pipeline_mode<synchronous>, transform_indices = @transform_8, window_bounds = array<i64: 2, 16>}, {pipeline_mode = #tpu.pipeline_mode<synchronous>, transform_indices = @transform_9, window_bounds = array<i64: 16, 128>}, {pipeline_mode = #tpu.pipeline_mode<synchronous>, transform_indices = @transform_10, window_bounds = array<i64: 1, 128>}, {pipeline_mode = #tpu.pipeline_mode<synchronous>, transform_indices = @transform_11, window_bounds = array<i64: 20, 160>}, {pipeline_mode = #tpu.pipeline_mode<synchronous>, transform_indices = @transform_12, window_bounds = array<i64: 4, 160>}, {pipeline_mode = #tpu.pipeline_mode<synchronous>, transform_indices = @transform_13, window_bounds = array<i64: 3, 160, 160>}, {pipeline_mode = #tpu.pipeline_mode<synchronous>, transform_indices = @transform_14, window_bounds = array<i64: 2, 160, 50>}, {pipeline_mode = #tpu.pipeline_mode<synchronous>, transform_indices = @transform_15, window_bounds = array<i64: 2, 50>}, {pipeline_mode = #tpu.pipeline_mode<synchronous>, transform_indices = @transform_16, window_bounds = array<i64: 10, 128>}, {transform_indices = @transform_17, window_bounds = array<i64: 8, 128>}]} {
    %c0 = arith.constant 0 : index
    %c0_0 = arith.constant 0 : index
    %0 = vector.load %arg1[%c0, %c0_0] : memref<64x6xf32, #tpu.memory_space<vmem>>, vector<64x6xf32>
    %c0_1 = arith.constant 0 : index
    %c0_2 = arith.constant 0 : index
    %1 = vector.load %arg6[%c0_1, %c0_2] : memref<6x16xf32, #tpu.memory_space<vmem>>, vector<6x16xf32>
    %cst = arith.constant dense<0.000000e+00> : vector<64x16xf32>
    %2 = tpu.matmul %0, %1, %cst {dimension_numbers = #tpu.dot_dimension_numbers<[1], [0], [0], [1], [0, 0, 1, 1], [], []>} : vector<64x6xf32>, vector<6x16xf32>, vector<64x16xf32> -> vector<64x16xf32>
    %cst_3 = arith.constant 5.000000e-01 : f32
    %3 = vector.broadcast %cst_3 : f32 to vector<64x16xf32>
    %4 = arith.mulf %3, %2 : vector<64x16xf32>
    %cst_4 = arith.constant 4.471500e-02 : f32
    %5 = vector.broadcast %cst_4 : f32 to vector<64x16xf32>
    %6 = arith.mulf %5, %2 : vector<64x16xf32>
    %7 = arith.mulf %6, %2 : vector<64x16xf32>
    %8 = arith.mulf %7, %2 : vector<64x16xf32>
    %9 = arith.addf %2, %8 : vector<64x16xf32>
    %cst_5 = arith.constant 0.797884583 : f32
    %10 = vector.broadcast %cst_5 : f32 to vector<64x16xf32>
    %11 = arith.mulf %10, %9 : vector<64x16xf32>
    %12 = math.tanh %11 : vector<64x16xf32>
    %cst_6 = arith.constant 1.000000e+00 : f32
    %13 = vector.broadcast %cst_6 : f32 to vector<64x16xf32>
    %14 = arith.addf %13, %12 : vector<64x16xf32>
    %15 = arith.mulf %4, %14 : vector<64x16xf32>
    %16 = vector.shape_cast %15 : vector<64x16xf32> to vector<8x8x16xf32>
    %c0_7 = arith.constant 0 : index
    %c0_8 = arith.constant 0 : index
    %c0_9 = arith.constant 0 : index
    %17 = vector.load %arg2[%c0_7, %c0_8, %c0_9] : memref<8x8x1xf32, #tpu.memory_space<vmem>>, vector<8x8x1xf32>
    %18 = vector.broadcast %17 : vector<8x8x1xf32> to vector<8x8x16xf32>
    %19 = arith.mulf %16, %18 : vector<8x8x16xf32>
    %cst_10 = arith.constant dense<0.000000e+00> : vector<8x16xf32>
    %20 = vector.multi_reduction <add>, %19, %cst_10 [1] : vector<8x8x16xf32> to vector<8x16xf32>
    %cst_11 = arith.constant dense<0.000000e+00> : vector<8x1xf32>
    %21 = vector.multi_reduction <add>, %17, %cst_11 [1] : vector<8x8x1xf32> to vector<8x1xf32>
    %c0_12 = arith.constant 0 : index
    %c0_13 = arith.constant 0 : index
    %22 = vector.load %arg4[%c0_12, %c0_13] : memref<8x1xf32, #tpu.memory_space<vmem>>, vector<8x1xf32>
    %c0_14 = arith.constant 0 : index
    %c0_15 = arith.constant 0 : index
    %23 = vector.load %arg3[%c0_14, %c0_15] : memref<8x3xf32, #tpu.memory_space<vmem>>, vector<8x3xf32>
    %c0_16 = arith.constant 0 : index
    %c0_17 = arith.constant 0 : index
    %24 = vector.load %arg7[%c0_16, %c0_17] : memref<3x16xf32, #tpu.memory_space<vmem>>, vector<3x16xf32>
    %cst_18 = arith.constant dense<0.000000e+00> : vector<8x16xf32>
    %25 = tpu.matmul %23, %24, %cst_18 {dimension_numbers = #tpu.dot_dimension_numbers<[1], [0], [0], [1], [0, 0, 1, 1], [], []>} : vector<8x3xf32>, vector<3x16xf32>, vector<8x16xf32> -> vector<8x16xf32>
    %cst_19 = arith.constant 5.000000e-01 : f32
    %26 = vector.broadcast %cst_19 : f32 to vector<8x16xf32>
    %27 = arith.mulf %26, %25 : vector<8x16xf32>
    %cst_20 = arith.constant 4.471500e-02 : f32
    %28 = vector.broadcast %cst_20 : f32 to vector<8x16xf32>
    %29 = arith.mulf %28, %25 : vector<8x16xf32>
    %30 = arith.mulf %29, %25 : vector<8x16xf32>
    %31 = arith.mulf %30, %25 : vector<8x16xf32>
    %32 = arith.addf %25, %31 : vector<8x16xf32>
    %cst_21 = arith.constant 0.797884583 : f32
    %33 = vector.broadcast %cst_21 : f32 to vector<8x16xf32>
    %34 = arith.mulf %33, %32 : vector<8x16xf32>
    %35 = math.tanh %34 : vector<8x16xf32>
    %cst_22 = arith.constant 1.000000e+00 : f32
    %36 = vector.broadcast %cst_22 : f32 to vector<8x16xf32>
    %37 = arith.addf %36, %35 : vector<8x16xf32>
    %38 = arith.mulf %27, %37 : vector<8x16xf32>
    %39 = arith.addf %21, %22 : vector<8x1xf32>
    %cst_23 = arith.constant 1.000000e+00 : f32
    %40 = vector.broadcast %cst_23 : f32 to vector<8x1xf32>
    %41 = arith.maximumf %39, %40 : vector<8x1xf32>
    %42 = vector.broadcast %22 : vector<8x1xf32> to vector<8x16xf32>
    %43 = arith.mulf %42, %38 : vector<8x16xf32>
    %44 = arith.addf %20, %43 : vector<8x16xf32>
    %45 = tpu.reciprocal %41 {approx = true} : vector<8x1xf32> -> vector<8x1xf32>
    %46 = vector.broadcast %45 : vector<8x1xf32> to vector<8x16xf32>
    %47 = arith.mulf %44, %46 : vector<8x16xf32>
    %c0_24 = arith.constant 0 : index
    %c0_25 = arith.constant 0 : index
    %c0_26 = arith.constant 0 : index
    %48 = vector.load %arg8[%c0_24, %c0_25, %c0_26] : memref<2x16x16xf32, #tpu.memory_space<vmem>>, vector<1x16x16xf32>
    %49 = vector.shape_cast %48 : vector<1x16x16xf32> to vector<16x16xf32>
    %cst_27 = arith.constant dense<0.000000e+00> : vector<8x16xf32>
    %50 = tpu.matmul %47, %49, %cst_27 {dimension_numbers = #tpu.dot_dimension_numbers<[1], [0], [0], [1], [0, 0, 1, 1], [], []>} : vector<8x16xf32>, vector<16x16xf32>, vector<8x16xf32> -> vector<8x16xf32>
    %c0_28 = arith.constant 0 : index
    %c0_29 = arith.constant 0 : index
    %51 = vector.load %arg9[%c0_28, %c0_29] : memref<2x16xf32, #tpu.memory_space<vmem>>, vector<1x16xf32>
    %52 = vector.broadcast %51 : vector<1x16xf32> to vector<8x16xf32>
    %53 = arith.addf %50, %52 : vector<8x16xf32>
    %cst_30 = arith.constant 5.000000e-01 : f32
    %54 = vector.broadcast %cst_30 : f32 to vector<8x16xf32>
    %55 = arith.mulf %54, %53 : vector<8x16xf32>
    %cst_31 = arith.constant 4.471500e-02 : f32
    %56 = vector.broadcast %cst_31 : f32 to vector<8x16xf32>
    %57 = arith.mulf %56, %53 : vector<8x16xf32>
    %58 = arith.mulf %57, %53 : vector<8x16xf32>
    %59 = arith.mulf %58, %53 : vector<8x16xf32>
    %60 = arith.addf %53, %59 : vector<8x16xf32>
    %cst_32 = arith.constant 0.797884583 : f32
    %61 = vector.broadcast %cst_32 : f32 to vector<8x16xf32>
    %62 = arith.mulf %61, %60 : vector<8x16xf32>
    %63 = math.tanh %62 : vector<8x16xf32>
    %cst_33 = arith.constant 1.000000e+00 : f32
    %64 = vector.broadcast %cst_33 : f32 to vector<8x16xf32>
    %65 = arith.addf %64, %63 : vector<8x16xf32>
    %66 = arith.mulf %55, %65 : vector<8x16xf32>
    %c1 = arith.constant 1 : index
    %c0_34 = arith.constant 0 : index
    %c0_35 = arith.constant 0 : index
    %67 = vector.load %arg8[%c1, %c0_34, %c0_35] : memref<2x16x16xf32, #tpu.memory_space<vmem>>, vector<1x16x16xf32>
    %68 = vector.shape_cast %67 : vector<1x16x16xf32> to vector<16x16xf32>
    %cst_36 = arith.constant dense<0.000000e+00> : vector<8x16xf32>
    %69 = tpu.matmul %66, %68, %cst_36 {dimension_numbers = #tpu.dot_dimension_numbers<[1], [0], [0], [1], [0, 0, 1, 1], [], []>} : vector<8x16xf32>, vector<16x16xf32>, vector<8x16xf32> -> vector<8x16xf32>
    %c1_37 = arith.constant 1 : index
    %c0_38 = arith.constant 0 : index
    %70 = vector.load %arg9[%c1_37, %c0_38] : memref<2x16xf32, #tpu.memory_space<vmem>>, vector<1x16xf32>
    %71 = vector.broadcast %70 : vector<1x16xf32> to vector<8x16xf32>
    %72 = arith.addf %69, %71 : vector<8x16xf32>
    %cst_39 = arith.constant 5.000000e-01 : f32
    %73 = vector.broadcast %cst_39 : f32 to vector<8x16xf32>
    %74 = arith.mulf %73, %72 : vector<8x16xf32>
    %cst_40 = arith.constant 4.471500e-02 : f32
    %75 = vector.broadcast %cst_40 : f32 to vector<8x16xf32>
    %76 = arith.mulf %75, %72 : vector<8x16xf32>
    %77 = arith.mulf %76, %72 : vector<8x16xf32>
    %78 = arith.mulf %77, %72 : vector<8x16xf32>
    %79 = arith.addf %72, %78 : vector<8x16xf32>
    %cst_41 = arith.constant 0.797884583 : f32
    %80 = vector.broadcast %cst_41 : f32 to vector<8x16xf32>
    %81 = arith.mulf %80, %79 : vector<8x16xf32>
    %82 = math.tanh %81 : vector<8x16xf32>
    %cst_42 = arith.constant 1.000000e+00 : f32
    %83 = vector.broadcast %cst_42 : f32 to vector<8x16xf32>
    %84 = arith.addf %83, %82 : vector<8x16xf32>
    %85 = arith.mulf %74, %84 : vector<8x16xf32>
    %c0_43 = arith.constant 0 : index
    %c0_44 = arith.constant 0 : index
    %86 = vector.load %arg10[%c0_43, %c0_44] : memref<16x128xf32, #tpu.memory_space<vmem>>, vector<16x128xf32>
    %cst_45 = arith.constant dense<0.000000e+00> : vector<8x128xf32>
    %87 = tpu.matmul %85, %86, %cst_45 {dimension_numbers = #tpu.dot_dimension_numbers<[1], [0], [0], [1], [0, 0, 1, 1], [], []>} : vector<8x16xf32>, vector<16x128xf32>, vector<8x128xf32> -> vector<8x128xf32>
    %c0_46 = arith.constant 0 : index
    %c0_47 = arith.constant 0 : index
    %88 = vector.load %arg11[%c0_46, %c0_47] : memref<1x128xf32, #tpu.memory_space<vmem>>, vector<1x128xf32>
    %89 = vector.broadcast %88 : vector<1x128xf32> to vector<8x128xf32>
    %90 = arith.addf %87, %89 : vector<8x128xf32>
    %91 = vector.extract_strided_slice %90 {offsets = [0, 0], sizes = [8, 20], strides = [1, 1]} : vector<8x128xf32> to vector<8x20xf32>
    %92 = tpu.iota {dimensions = array<i32: 1>} : vector<8x20xi32>
    %c10_i32 = arith.constant 10 : i32
    %93 = vector.broadcast %c10_i32 : i32 to vector<8x20xi32>
    %94 = arith.cmpi slt, %92, %93 : vector<8x20xi32>
    %c2_i32 = arith.constant 2 : i32
    %c0_i32 = arith.constant 0 : i32
    %95 = arith.cmpi eq, %c2_i32, %c0_i32 : i32
    %c1_i32 = arith.constant 1 : i32
    %96 = arith.select %95, %c1_i32, %c2_i32 : i32
    %97 = vector.broadcast %96 : i32 to vector<8x20xi32>
    %98 = arith.remsi %92, %97 : vector<8x20xi32>
    %c0_i32_48 = arith.constant 0 : i32
    %99 = vector.broadcast %c0_i32_48 : i32 to vector<8x20xi32>
    %100 = arith.cmpi ne, %98, %99 : vector<8x20xi32>
    %c0_i32_49 = arith.constant 0 : i32
    %101 = vector.broadcast %c0_i32_49 : i32 to vector<8x20xi32>
    %102 = arith.cmpi slt, %98, %101 : vector<8x20xi32>
    %c0_i32_50 = arith.constant 0 : i32
    %103 = arith.cmpi slt, %96, %c0_i32_50 : i32
    %104 = vector.broadcast %103 : i1 to vector<8x20xi1>
    %105 = vector.broadcast %104 : vector<8x20xi1> to vector<8x20xi1>
    %106 = arith.xori %102, %105 : vector<8x20xi1>
    %107 = arith.andi %106, %100 : vector<8x20xi1>
    %108 = vector.broadcast %96 : i32 to vector<8x20xi32>
    %109 = arith.addi %98, %108 : vector<8x20xi32>
    %110 = arith.select %107, %109, %98 : vector<8x20xi1>, vector<8x20xi32>
    %c0_i32_51 = arith.constant 0 : i32
    %111 = vector.broadcast %c0_i32_51 : i32 to vector<8x20xi32>
    %112 = arith.cmpi eq, %110, %111 : vector<8x20xi32>
    %113 = arith.andi %94, %112 : vector<8x20xi1>
    %114 = math.absf %91 : vector<8x20xf32>
    %cst_52 = arith.constant 0.000000e+00 : f32
    %115 = vector.broadcast %cst_52 : f32 to vector<8x20xf32>
    %116 = arith.subf %115, %114 : vector<8x20xf32>
    %117 = math.exp %116 : vector<8x20xf32>
    %cst_53 = arith.constant 0.414213568 : f32
    %118 = vector.broadcast %cst_53 : f32 to vector<8x20xf32>
    %119 = arith.cmpf ogt, %117, %118 : vector<8x20xf32>
    %cst_54 = arith.constant 1.000000e+00 : f32
    %120 = vector.broadcast %cst_54 : f32 to vector<8x20xf32>
    %121 = arith.subf %117, %120 : vector<8x20xf32>
    %cst_55 = arith.constant 1.000000e+00 : f32
    %122 = vector.broadcast %cst_55 : f32 to vector<8x20xf32>
    %123 = arith.addf %117, %122 : vector<8x20xf32>
    %124 = arith.divf %121, %123 : vector<8x20xf32>
    %125 = arith.select %119, %124, %117 : vector<8x20xi1>, vector<8x20xf32>
    %cst_56 = arith.constant 0.785398185 : f32
    %cst_57 = arith.constant 0.000000e+00 : f32
    %126 = vector.broadcast %cst_56 : f32 to vector<8x20xf32>
    %127 = vector.broadcast %cst_57 : f32 to vector<8x20xf32>
    %128 = arith.select %119, %126, %127 : vector<8x20xi1>, vector<8x20xf32>
    %129 = arith.mulf %125, %125 : vector<8x20xf32>
    %cst_58 = arith.constant 0.0805374458 : f32
    %130 = vector.broadcast %cst_58 : f32 to vector<8x20xf32>
    %131 = arith.mulf %130, %129 : vector<8x20xf32>
    %cst_59 = arith.constant 0.138776854 : f32
    %132 = vector.broadcast %cst_59 : f32 to vector<8x20xf32>
    %133 = arith.subf %131, %132 : vector<8x20xf32>
    %134 = arith.mulf %133, %129 : vector<8x20xf32>
    %cst_60 = arith.constant 0.199777111 : f32
    %135 = vector.broadcast %cst_60 : f32 to vector<8x20xf32>
    %136 = arith.addf %134, %135 : vector<8x20xf32>
    %137 = arith.mulf %136, %129 : vector<8x20xf32>
    %cst_61 = arith.constant 0.333329499 : f32
    %138 = vector.broadcast %cst_61 : f32 to vector<8x20xf32>
    %139 = arith.subf %137, %138 : vector<8x20xf32>
    %140 = arith.mulf %139, %129 : vector<8x20xf32>
    %141 = arith.mulf %140, %125 : vector<8x20xf32>
    %142 = arith.addf %141, %125 : vector<8x20xf32>
    %143 = arith.addf %128, %142 : vector<8x20xf32>
    %cst_62 = arith.constant 0.000000e+00 : f32
    %144 = vector.broadcast %cst_62 : f32 to vector<8x20xf32>
    %145 = arith.cmpf oge, %91, %144 : vector<8x20xf32>
    %cst_63 = arith.constant 2.000000e+00 : f32
    %146 = vector.broadcast %cst_63 : f32 to vector<8x20xf32>
    %147 = arith.mulf %146, %143 : vector<8x20xf32>
    %cst_64 = arith.constant 2.000000e+00 : f32
    %148 = vector.broadcast %cst_64 : f32 to vector<8x20xf32>
    %149 = arith.mulf %148, %143 : vector<8x20xf32>
    %cst_65 = arith.constant 3.14159274 : f32
    %150 = vector.broadcast %cst_65 : f32 to vector<8x20xf32>
    %151 = arith.subf %150, %149 : vector<8x20xf32>
    %152 = arith.select %145, %147, %151 : vector<8x20xi1>, vector<8x20xf32>
    %153 = arith.select %113, %152, %91 : vector<8x20xi1>, vector<8x20xf32>
    %c0_66 = arith.constant 0 : index
    %c0_67 = arith.constant 0 : index
    %154 = vector.load %arg12[%c0_66, %c0_67] : memref<20x160xf32, #tpu.memory_space<vmem>>, vector<20x160xf32>
    %cst_68 = arith.constant dense<0.000000e+00> : vector<8x160xf32>
    %155 = tpu.matmul %153, %154, %cst_68 {dimension_numbers = #tpu.dot_dimension_numbers<[1], [0], [0], [1], [0, 0, 1, 1], [], []>} : vector<8x20xf32>, vector<20x160xf32>, vector<8x160xf32> -> vector<8x160xf32>
    %c0_69 = arith.constant 0 : index
    %c0_70 = arith.constant 0 : index
    %156 = vector.load %arg13[%c0_69, %c0_70] : memref<4x160xf32, #tpu.memory_space<vmem>>, vector<1x160xf32>
    %157 = vector.broadcast %156 : vector<1x160xf32> to vector<8x160xf32>
    %158 = arith.addf %155, %157 : vector<8x160xf32>
    %cst_71 = arith.constant 5.000000e-01 : f32
    %159 = vector.broadcast %cst_71 : f32 to vector<8x160xf32>
    %160 = arith.mulf %159, %158 : vector<8x160xf32>
    %cst_72 = arith.constant 4.471500e-02 : f32
    %161 = vector.broadcast %cst_72 : f32 to vector<8x160xf32>
    %162 = arith.mulf %161, %158 : vector<8x160xf32>
    %163 = arith.mulf %162, %158 : vector<8x160xf32>
    %164 = arith.mulf %163, %158 : vector<8x160xf32>
    %165 = arith.addf %158, %164 : vector<8x160xf32>
    %cst_73 = arith.constant 0.797884583 : f32
    %166 = vector.broadcast %cst_73 : f32 to vector<8x160xf32>
    %167 = arith.mulf %166, %165 : vector<8x160xf32>
    %168 = math.tanh %167 : vector<8x160xf32>
    %cst_74 = arith.constant 1.000000e+00 : f32
    %169 = vector.broadcast %cst_74 : f32 to vector<8x160xf32>
    %170 = arith.addf %169, %168 : vector<8x160xf32>
    %171 = arith.mulf %160, %170 : vector<8x160xf32>
    %c0_75 = arith.constant 0 : index
    %c0_76 = arith.constant 0 : index
    %c0_77 = arith.constant 0 : index
    %172 = vector.load %arg14[%c0_75, %c0_76, %c0_77] : memref<3x160x160xf32, #tpu.memory_space<vmem>>, vector<1x160x160xf32>
    %173 = vector.shape_cast %172 : vector<1x160x160xf32> to vector<160x160xf32>
    %cst_78 = arith.constant dense<0.000000e+00> : vector<8x160xf32>
    %174 = tpu.matmul %171, %173, %cst_78 {dimension_numbers = #tpu.dot_dimension_numbers<[1], [0], [0], [1], [0, 0, 1, 1], [], []>} : vector<8x160xf32>, vector<160x160xf32>, vector<8x160xf32> -> vector<8x160xf32>
    %c1_79 = arith.constant 1 : index
    %c0_80 = arith.constant 0 : index
    %175 = vector.load %arg13[%c1_79, %c0_80] : memref<4x160xf32, #tpu.memory_space<vmem>>, vector<1x160xf32>
    %176 = vector.broadcast %175 : vector<1x160xf32> to vector<8x160xf32>
    %177 = arith.addf %174, %176 : vector<8x160xf32>
    %cst_81 = arith.constant 5.000000e-01 : f32
    %178 = vector.broadcast %cst_81 : f32 to vector<8x160xf32>
    %179 = arith.mulf %178, %177 : vector<8x160xf32>
    %cst_82 = arith.constant 4.471500e-02 : f32
    %180 = vector.broadcast %cst_82 : f32 to vector<8x160xf32>
    %181 = arith.mulf %180, %177 : vector<8x160xf32>
    %182 = arith.mulf %181, %177 : vector<8x160xf32>
    %183 = arith.mulf %182, %177 : vector<8x160xf32>
    %184 = arith.addf %177, %183 : vector<8x160xf32>
    %cst_83 = arith.constant 0.797884583 : f32
    %185 = vector.broadcast %cst_83 : f32 to vector<8x160xf32>
    %186 = arith.mulf %185, %184 : vector<8x160xf32>
    %187 = math.tanh %186 : vector<8x160xf32>
    %cst_84 = arith.constant 1.000000e+00 : f32
    %188 = vector.broadcast %cst_84 : f32 to vector<8x160xf32>
    %189 = arith.addf %188, %187 : vector<8x160xf32>
    %190 = arith.mulf %179, %189 : vector<8x160xf32>
    %c1_85 = arith.constant 1 : index
    %c0_86 = arith.constant 0 : index
    %c0_87 = arith.constant 0 : index
    %191 = vector.load %arg14[%c1_85, %c0_86, %c0_87] : memref<3x160x160xf32, #tpu.memory_space<vmem>>, vector<1x160x160xf32>
    %192 = vector.shape_cast %191 : vector<1x160x160xf32> to vector<160x160xf32>
    %cst_88 = arith.constant dense<0.000000e+00> : vector<8x160xf32>
    %193 = tpu.matmul %190, %192, %cst_88 {dimension_numbers = #tpu.dot_dimension_numbers<[1], [0], [0], [1], [0, 0, 1, 1], [], []>} : vector<8x160xf32>, vector<160x160xf32>, vector<8x160xf32> -> vector<8x160xf32>
    %c2 = arith.constant 2 : index
    %c0_89 = arith.constant 0 : index
    %194 = vector.load %arg13[%c2, %c0_89] : memref<4x160xf32, #tpu.memory_space<vmem>>, vector<1x160xf32>
    %195 = vector.broadcast %194 : vector<1x160xf32> to vector<8x160xf32>
    %196 = arith.addf %193, %195 : vector<8x160xf32>
    %cst_90 = arith.constant 5.000000e-01 : f32
    %197 = vector.broadcast %cst_90 : f32 to vector<8x160xf32>
    %198 = arith.mulf %197, %196 : vector<8x160xf32>
    %cst_91 = arith.constant 4.471500e-02 : f32
    %199 = vector.broadcast %cst_91 : f32 to vector<8x160xf32>
    %200 = arith.mulf %199, %196 : vector<8x160xf32>
    %201 = arith.mulf %200, %196 : vector<8x160xf32>
    %202 = arith.mulf %201, %196 : vector<8x160xf32>
    %203 = arith.addf %196, %202 : vector<8x160xf32>
    %cst_92 = arith.constant 0.797884583 : f32
    %204 = vector.broadcast %cst_92 : f32 to vector<8x160xf32>
    %205 = arith.mulf %204, %203 : vector<8x160xf32>
    %206 = math.tanh %205 : vector<8x160xf32>
    %cst_93 = arith.constant 1.000000e+00 : f32
    %207 = vector.broadcast %cst_93 : f32 to vector<8x160xf32>
    %208 = arith.addf %207, %206 : vector<8x160xf32>
    %209 = arith.mulf %198, %208 : vector<8x160xf32>
    %c2_94 = arith.constant 2 : index
    %c0_95 = arith.constant 0 : index
    %c0_96 = arith.constant 0 : index
    %210 = vector.load %arg14[%c2_94, %c0_95, %c0_96] : memref<3x160x160xf32, #tpu.memory_space<vmem>>, vector<1x160x160xf32>
    %211 = vector.shape_cast %210 : vector<1x160x160xf32> to vector<160x160xf32>
    %cst_97 = arith.constant dense<0.000000e+00> : vector<8x160xf32>
    %212 = tpu.matmul %209, %211, %cst_97 {dimension_numbers = #tpu.dot_dimension_numbers<[1], [0], [0], [1], [0, 0, 1, 1], [], []>} : vector<8x160xf32>, vector<160x160xf32>, vector<8x160xf32> -> vector<8x160xf32>
    %c3 = arith.constant 3 : index
    %c0_98 = arith.constant 0 : index
    %213 = vector.load %arg13[%c3, %c0_98] : memref<4x160xf32, #tpu.memory_space<vmem>>, vector<1x160xf32>
    %214 = vector.broadcast %213 : vector<1x160xf32> to vector<8x160xf32>
    %215 = arith.addf %212, %214 : vector<8x160xf32>
    %cst_99 = arith.constant 5.000000e-01 : f32
    %216 = vector.broadcast %cst_99 : f32 to vector<8x160xf32>
    %217 = arith.mulf %216, %215 : vector<8x160xf32>
    %cst_100 = arith.constant 4.471500e-02 : f32
    %218 = vector.broadcast %cst_100 : f32 to vector<8x160xf32>
    %219 = arith.mulf %218, %215 : vector<8x160xf32>
    %220 = arith.mulf %219, %215 : vector<8x160xf32>
    %221 = arith.mulf %220, %215 : vector<8x160xf32>
    %222 = arith.addf %215, %221 : vector<8x160xf32>
    %cst_101 = arith.constant 0.797884583 : f32
    %223 = vector.broadcast %cst_101 : f32 to vector<8x160xf32>
    %224 = arith.mulf %223, %222 : vector<8x160xf32>
    %225 = math.tanh %224 : vector<8x160xf32>
    %cst_102 = arith.constant 1.000000e+00 : f32
    %226 = vector.broadcast %cst_102 : f32 to vector<8x160xf32>
    %227 = arith.addf %226, %225 : vector<8x160xf32>
    %228 = arith.mulf %217, %227 : vector<8x160xf32>
    %c0_103 = arith.constant 0 : index
    %c0_104 = arith.constant 0 : index
    %c0_105 = arith.constant 0 : index
    %229 = vector.load %arg15[%c0_103, %c0_104, %c0_105] : memref<2x160x50xf32, #tpu.memory_space<vmem>>, vector<1x160x50xf32>
    %230 = vector.shape_cast %229 : vector<1x160x50xf32> to vector<160x50xf32>
    %cst_106 = arith.constant dense<0.000000e+00> : vector<8x50xf32>
    %231 = tpu.matmul %228, %230, %cst_106 {dimension_numbers = #tpu.dot_dimension_numbers<[1], [0], [0], [1], [0, 0, 1, 1], [], []>} : vector<8x160xf32>, vector<160x50xf32>, vector<8x50xf32> -> vector<8x50xf32>
    %c0_107 = arith.constant 0 : index
    %c0_108 = arith.constant 0 : index
    %232 = vector.load %arg16[%c0_107, %c0_108] : memref<2x50xf32, #tpu.memory_space<vmem>>, vector<1x50xf32>
    %233 = vector.broadcast %232 : vector<1x50xf32> to vector<8x50xf32>
    %234 = arith.addf %231, %233 : vector<8x50xf32>
    %c1_109 = arith.constant 1 : index
    %c0_110 = arith.constant 0 : index
    %c0_111 = arith.constant 0 : index
    %235 = vector.load %arg15[%c1_109, %c0_110, %c0_111] : memref<2x160x50xf32, #tpu.memory_space<vmem>>, vector<1x160x50xf32>
    %236 = vector.shape_cast %235 : vector<1x160x50xf32> to vector<160x50xf32>
    %cst_112 = arith.constant dense<0.000000e+00> : vector<8x50xf32>
    %237 = tpu.matmul %228, %236, %cst_112 {dimension_numbers = #tpu.dot_dimension_numbers<[1], [0], [0], [1], [0, 0, 1, 1], [], []>} : vector<8x160xf32>, vector<160x50xf32>, vector<8x50xf32> -> vector<8x50xf32>
    %c1_113 = arith.constant 1 : index
    %c0_114 = arith.constant 0 : index
    %238 = vector.load %arg16[%c1_113, %c0_114] : memref<2x50xf32, #tpu.memory_space<vmem>>, vector<1x50xf32>
    %239 = vector.broadcast %238 : vector<1x50xf32> to vector<8x50xf32>
    %240 = arith.addf %237, %239 : vector<8x50xf32>
    %241 = math.tanh %240 : vector<8x50xf32>
    %cst_115 = arith.constant 0.000000e+00 : f32
    %242 = vector.broadcast %cst_115 : f32 to vector<8x50xf32>
    %243 = arith.subf %242, %241 : vector<8x50xf32>
    %244 = math.exp %243 : vector<8x50xf32>
    %c0_116 = arith.constant 0 : index
    %c0_117 = arith.constant 0 : index
    %245 = vector.load %arg5[%c0_116, %c0_117] : memref<8x10xf32, #tpu.memory_space<vmem>>, vector<8x10xf32>
    %cst_118 = arith.constant 0.000000e+00 : f32
    %246 = vector.broadcast %cst_118 : f32 to vector<8x10xf32>
    %247 = vector.extract_strided_slice %234 {offsets = [0, 0], sizes = [8, 10], strides = [1, 1]} : vector<8x50xf32> to vector<8x10xf32>
    %248 = arith.subf %245, %247 : vector<8x10xf32>
    %249 = vector.extract_strided_slice %244 {offsets = [0, 0], sizes = [8, 10], strides = [1, 1]} : vector<8x50xf32> to vector<8x10xf32>
    %250 = arith.mulf %248, %249 : vector<8x10xf32>
    %251 = vector.extract_strided_slice %241 {offsets = [0, 0], sizes = [8, 10], strides = [1, 1]} : vector<8x50xf32> to vector<8x10xf32>
    %252 = arith.addf %246, %251 : vector<8x10xf32>
    %253 = vector.extract_strided_slice %234 {offsets = [0, 10], sizes = [8, 10], strides = [1, 1]} : vector<8x50xf32> to vector<8x10xf32>
    %254 = arith.subf %250, %253 : vector<8x10xf32>
    %255 = vector.extract_strided_slice %244 {offsets = [0, 10], sizes = [8, 10], strides = [1, 1]} : vector<8x50xf32> to vector<8x10xf32>
    %256 = arith.mulf %254, %255 : vector<8x10xf32>
    %257 = vector.extract_strided_slice %241 {offsets = [0, 10], sizes = [8, 10], strides = [1, 1]} : vector<8x50xf32> to vector<8x10xf32>
    %258 = arith.addf %252, %257 : vector<8x10xf32>
    %259 = vector.extract_strided_slice %234 {offsets = [0, 20], sizes = [8, 10], strides = [1, 1]} : vector<8x50xf32> to vector<8x10xf32>
    %260 = arith.subf %256, %259 : vector<8x10xf32>
    %261 = vector.extract_strided_slice %244 {offsets = [0, 20], sizes = [8, 10], strides = [1, 1]} : vector<8x50xf32> to vector<8x10xf32>
    %262 = arith.mulf %260, %261 : vector<8x10xf32>
    %263 = vector.extract_strided_slice %241 {offsets = [0, 20], sizes = [8, 10], strides = [1, 1]} : vector<8x50xf32> to vector<8x10xf32>
    %264 = arith.addf %258, %263 : vector<8x10xf32>
    %265 = vector.extract_strided_slice %234 {offsets = [0, 30], sizes = [8, 10], strides = [1, 1]} : vector<8x50xf32> to vector<8x10xf32>
    %266 = arith.subf %262, %265 : vector<8x10xf32>
    %267 = vector.extract_strided_slice %244 {offsets = [0, 30], sizes = [8, 10], strides = [1, 1]} : vector<8x50xf32> to vector<8x10xf32>
    %268 = arith.mulf %266, %267 : vector<8x10xf32>
    %269 = vector.extract_strided_slice %241 {offsets = [0, 30], sizes = [8, 10], strides = [1, 1]} : vector<8x50xf32> to vector<8x10xf32>
    %270 = arith.addf %264, %269 : vector<8x10xf32>
    %271 = vector.extract_strided_slice %234 {offsets = [0, 40], sizes = [8, 10], strides = [1, 1]} : vector<8x50xf32> to vector<8x10xf32>
    %272 = arith.subf %268, %271 : vector<8x10xf32>
    %273 = vector.extract_strided_slice %244 {offsets = [0, 40], sizes = [8, 10], strides = [1, 1]} : vector<8x50xf32> to vector<8x10xf32>
    %274 = arith.mulf %272, %273 : vector<8x10xf32>
    %275 = vector.extract_strided_slice %241 {offsets = [0, 40], sizes = [8, 10], strides = [1, 1]} : vector<8x50xf32> to vector<8x10xf32>
    %276 = arith.addf %270, %275 : vector<8x10xf32>
    %cst_119 = arith.constant 5.000000e-01 : f32
    %277 = vector.broadcast %cst_119 : f32 to vector<8x10xf32>
    %278 = arith.mulf %277, %274 : vector<8x10xf32>
    %279 = arith.mulf %278, %274 : vector<8x10xf32>
    %280 = arith.addf %279, %276 : vector<8x10xf32>
    %c0_120 = arith.constant 0 : index
    %c0_121 = arith.constant 0 : index
    %281 = vector.load %arg17[%c0_120, %c0_121] : memref<10x128xf32, #tpu.memory_space<vmem>>, vector<10x128xf32>
    %cst_122 = arith.constant dense<0.000000e+00> : vector<8x128xf32>
    %282 = tpu.matmul %280, %281, %cst_122 {dimension_numbers = #tpu.dot_dimension_numbers<[1], [0], [0], [1], [0, 0, 1, 1], [], []>} : vector<8x10xf32>, vector<10x128xf32>, vector<8x128xf32> -> vector<8x128xf32>
    %283 = arith.subf %90, %282 : vector<8x128xf32>
    %c0_123 = arith.constant 0 : index
    %c0_124 = arith.constant 0 : index
    %284 = vector.load %arg18[%c0_123, %c0_124] : memref<8x128xf32, #tpu.memory_space<vmem>>, vector<8x128xf32>
    tpu.vector_store %arg18[%c0_123, %c0_124], %283 {strides = array<i32>} : memref<8x128xf32, #tpu.memory_space<vmem>>, vector<8x128xf32>,
    return
  }
  func.func @transform_0(%arg0: i32) -> (i32, i32) {
    %c0_i32 = arith.constant 0 : i32
    %c0_i32_0 = arith.constant 0 : i32
    return %arg0, %c0_i32 : i32, i32
  }
  func.func @transform_1(%arg0: i32) -> (i32, i32, i32) {
    %c0_i32 = arith.constant 0 : i32
    %c0_i32_0 = arith.constant 0 : i32
    %c0_i32_1 = arith.constant 0 : i32
    return %arg0, %c0_i32, %c0_i32_0 : i32, i32, i32
  }
  func.func @transform_2(%arg0: i32) -> (i32, i32) {
    %c0_i32 = arith.constant 0 : i32
    %c0_i32_0 = arith.constant 0 : i32
    return %arg0, %c0_i32 : i32, i32
  }
  func.func @transform_3(%arg0: i32) -> (i32, i32) {
    %c0_i32 = arith.constant 0 : i32
    %c0_i32_0 = arith.constant 0 : i32
    return %arg0, %c0_i32 : i32, i32
  }
  func.func @transform_4(%arg0: i32) -> (i32, i32) {
    %c0_i32 = arith.constant 0 : i32
    %c0_i32_0 = arith.constant 0 : i32
    return %arg0, %c0_i32 : i32, i32
  }
  func.func @transform_5(%arg0: i32) -> (i32, i32) {
    %c0_i32 = arith.constant 0 : i32
    %c0_i32_0 = arith.constant 0 : i32
    %c0_i32_1 = arith.constant 0 : i32
    return %c0_i32, %c0_i32_0 : i32, i32
  }
  func.func @transform_6(%arg0: i32) -> (i32, i32) {
    %c0_i32 = arith.constant 0 : i32
    %c0_i32_0 = arith.constant 0 : i32
    %c0_i32_1 = arith.constant 0 : i32
    return %c0_i32, %c0_i32_0 : i32, i32
  }
  func.func @transform_7(%arg0: i32) -> (i32, i32, i32) {
    %c0_i32 = arith.constant 0 : i32
    %c0_i32_0 = arith.constant 0 : i32
    %c0_i32_1 = arith.constant 0 : i32
    %c0_i32_2 = arith.constant 0 : i32
    return %c0_i32, %c0_i32_0, %c0_i32_1 : i32, i32, i32
  }
  func.func @transform_8(%arg0: i32) -> (i32, i32) {
    %c0_i32 = arith.constant 0 : i32
    %c0_i32_0 = arith.constant 0 : i32
    %c0_i32_1 = arith.constant 0 : i32
    return %c0_i32, %c0_i32_0 : i32, i32
  }
  func.func @transform_9(%arg0: i32) -> (i32, i32) {
    %c0_i32 = arith.constant 0 : i32
    %c0_i32_0 = arith.constant 0 : i32
    %c0_i32_1 = arith.constant 0 : i32
    return %c0_i32, %c0_i32_0 : i32, i32
  }
  func.func @transform_10(%arg0: i32) -> (i32, i32) {
    %c0_i32 = arith.constant 0 : i32
    %c0_i32_0 = arith.constant 0 : i32
    %c0_i32_1 = arith.constant 0 : i32
    return %c0_i32, %c0_i32_0 : i32, i32
  }
  func.func @transform_11(%arg0: i32) -> (i32, i32) {
    %c0_i32 = arith.constant 0 : i32
    %c0_i32_0 = arith.constant 0 : i32
    %c0_i32_1 = arith.constant 0 : i32
    return %c0_i32, %c0_i32_0 : i32, i32
  }
  func.func @transform_12(%arg0: i32) -> (i32, i32) {
    %c0_i32 = arith.constant 0 : i32
    %c0_i32_0 = arith.constant 0 : i32
    %c0_i32_1 = arith.constant 0 : i32
    return %c0_i32, %c0_i32_0 : i32, i32
  }
  func.func @transform_13(%arg0: i32) -> (i32, i32, i32) {
    %c0_i32 = arith.constant 0 : i32
    %c0_i32_0 = arith.constant 0 : i32
    %c0_i32_1 = arith.constant 0 : i32
    %c0_i32_2 = arith.constant 0 : i32
    return %c0_i32, %c0_i32_0, %c0_i32_1 : i32, i32, i32
  }
  func.func @transform_14(%arg0: i32) -> (i32, i32, i32) {
    %c0_i32 = arith.constant 0 : i32
    %c0_i32_0 = arith.constant 0 : i32
    %c0_i32_1 = arith.constant 0 : i32
    %c0_i32_2 = arith.constant 0 : i32
    return %c0_i32, %c0_i32_0, %c0_i32_1 : i32, i32, i32
  }
  func.func @transform_15(%arg0: i32) -> (i32, i32) {
    %c0_i32 = arith.constant 0 : i32
    %c0_i32_0 = arith.constant 0 : i32
    %c0_i32_1 = arith.constant 0 : i32
    return %c0_i32, %c0_i32_0 : i32, i32
  }
  func.func @transform_16(%arg0: i32) -> (i32, i32) {
    %c0_i32 = arith.constant 0 : i32
    %c0_i32_0 = arith.constant 0 : i32
    %c0_i32_1 = arith.constant 0 : i32
    return %c0_i32, %c0_i32_0 : i32, i32
  }
  func.func @transform_17(%arg0: i32) -> (i32, i32) {
    %c0_i32 = arith.constant 0 : i32
    %c0_i32_0 = arith.constant 0 : i32
    return %arg0, %c0_i32 : i32, i32
  }
}

</mosaic_0001>

<llo_original>
// kernel: unfolding_flow_forward.1
$region0: #{unfolding_flow_forward.1}
  #allocation0 [shape = 'u32[]', space=smem, size = 0x4, offset = 0x4, fixed_abs, tag = 'smem constant byte address 0x4 - core index']
  #allocation1 [shape = 'u32[144,128]{1,0:T(1,128)}', space=vmem, size = 0x12000, scoped, tag = 'internal scratch']
  %s0 = inlined_call_operand.vmem [shape: f32[64,6], index: 0, kind: input, shape index: {}]
  %s1 = inlined_call_operand.vmem [shape: f32[8,8,1], index: 1, kind: input, shape index: {}]
  %s2 = inlined_call_operand.vmem [shape: f32[8,3], index: 2, kind: input, shape index: {}]
  %s3 = inlined_call_operand.vmem [shape: f32[8,1], index: 3, kind: input, shape index: {}]
  %s4 = inlined_call_operand.vmem [shape: f32[8,10], index: 4, kind: input, shape index: {}]
  %s5 = inlined_call_operand.vmem [shape: f32[6,16], index: 5, kind: input, shape index: {}]
  %s6 = inlined_call_operand.vmem [shape: f32[3,16], index: 6, kind: input, shape index: {}]
  %s7 = inlined_call_operand.vmem [shape: f32[2,16,16], index: 7, kind: input, shape index: {}]
  %s8 = inlined_call_operand.vmem [shape: f32[2,16], index: 8, kind: input, shape index: {}]
  %s9 = inlined_call_operand.vmem [shape: f32[16,128], index: 9, kind: input, shape index: {}]
  %s10 = inlined_call_operand.vmem [shape: f32[1,128], index: 10, kind: input, shape index: {}]
  %s11 = inlined_call_operand.vmem [shape: f32[20,160], index: 11, kind: input, shape index: {}]
  %s12 = inlined_call_operand.vmem [shape: f32[4,160], index: 12, kind: input, shape index: {}]
  %s13 = inlined_call_operand.vmem [shape: f32[3,160,160], index: 13, kind: input, shape index: {}]
  %s14 = inlined_call_operand.vmem [shape: f32[2,160,50], index: 14, kind: input, shape index: {}]
  %s15 = inlined_call_operand.vmem [shape: f32[2,50], index: 15, kind: input, shape index: {}]
  %s16 = inlined_call_operand.vmem [shape: f32[10,128], index: 16, kind: input, shape index: {}]
  %s17 = inlined_call_operand.vmem [shape: f32[8,128], index: 17, kind: output, shape index: {}]
  %s18 = sld [smem:[#allocation0]]
  $region78: #{unfolding_flow_forward.1} parent=0
    _
  %s20 = ssub.s32 1, %s18
  %s21 = scalar_select 0, %s20, %s18
  // Predicated region
  $region2: #{unfolding_flow_forward.1} parent=0 // pred_check
    _
  $region3: #{unfolding_flow_forward.1} parent=0 // pred_check_branch
    %23 = sbr.rel (0) target = $region5
  $region4: #{unfolding_flow_forward.1} parent=0 // pred_region
    _
  $region5: #{unfolding_flow_forward.1} parent=0 // pred_fallthru
    _
  // Predicated region
  $region6: #{unfolding_flow_forward.1} parent=0 // pred_check
    _
  $region7: #{unfolding_flow_forward.1} parent=0 // pred_check_branch
    %25 = sbr.rel (0) target = $region9
  $region8: #{unfolding_flow_forward.1} parent=0 // pred_region
    _
  $region9: #{unfolding_flow_forward.1} parent=0 // pred_fallthru
    _
  // Predicated region
  $region10: #{unfolding_flow_forward.1} parent=0 // pred_check
    _
  $region11: #{unfolding_flow_forward.1} parent=0 // pred_check_branch
    %27 = sbr.rel (0) target = $region13
  $region12: #{unfolding_flow_forward.1} parent=0 // pred_region
    _
  $region13: #{unfolding_flow_forward.1} parent=0 // pred_fallthru
    _
  // Predicated region
  $region14: #{unfolding_flow_forward.1} parent=0 // pred_check
    _
  $region15: #{unfolding_flow_forward.1} parent=0 // pred_check_branch
    %29 = sbr.rel (0) target = $region17
  $region16: #{unfolding_flow_forward.1} parent=0 // pred_region
    _
  $region17: #{unfolding_flow_forward.1} parent=0 // pred_fallthru
    _
  // Predicated region
  $region18: #{unfolding_flow_forward.1} parent=0 // pred_check
    _
  $region19: #{unfolding_flow_forward.1} parent=0 // pred_check_branch
    %31 = sbr.rel (0) target = $region21
  $region20: #{unfolding_flow_forward.1} parent=0 // pred_region
    _
  $region21: #{unfolding_flow_forward.1} parent=0 // pred_fallthru
    _
  // Predicated region
  $region22: #{unfolding_flow_forward.1} parent=0 // pred_check
    _
  $region23: #{unfolding_flow_forward.1} parent=0 // pred_check_branch
    %33 = sbr.rel (0) target = $region25
  $region24: #{unfolding_flow_forward.1} parent=0 // pred_region
    _
  $region25: #{unfolding_flow_forward.1} parent=0 // pred_fallthru
    _
  // Predicated region
  $region26: #{unfolding_flow_forward.1} parent=0 // pred_check
    _
  $region27: #{unfolding_flow_forward.1} parent=0 // pred_check_branch
    %35 = sbr.rel (0) target = $region29
  $region28: #{unfolding_flow_forward.1} parent=0 // pred_region
    _
  $region29: #{unfolding_flow_forward.1} parent=0 // pred_fallthru
    _
  // Predicated region
  $region30: #{unfolding_flow_forward.1} parent=0 // pred_check
    _
  $region31: #{unfolding_flow_forward.1} parent=0 // pred_check_branch
    %37 = sbr.rel (0) target = $region33
  $region32: #{unfolding_flow_forward.1} parent=0 // pred_region
    _
  $region33: #{unfolding_flow_forward.1} parent=0 // pred_fallthru
    _
  // Predicated region
  $region34: #{unfolding_flow_forward.1} parent=0 // pred_check
    _
  $region35: #{unfolding_flow_forward.1} parent=0 // pred_check_branch
    %39 = sbr.rel (0) target = $region37
  $region36: #{unfolding_flow_forward.1} parent=0 // pred_region
    _
  $region37: #{unfolding_flow_forward.1} parent=0 // pred_fallthru
    _
  // Predicated region
  $region38: #{unfolding_flow_forward.1} parent=0 // pred_check
    _
  $region39: #{unfolding_flow_forward.1} parent=0 // pred_check_branch
    %41 = sbr.rel (0) target = $region41
  $region40: #{unfolding_flow_forward.1} parent=0 // pred_region
    _
  $region41: #{unfolding_flow_forward.1} parent=0 // pred_fallthru
    _
  // Predicated region
  $region42: #{unfolding_flow_forward.1} parent=0 // pred_check
    _
  $region43: #{unfolding_flow_forward.1} parent=0 // pred_check_branch
    %43 = sbr.rel (0) target = $region45
  $region44: #{unfolding_flow_forward.1} parent=0 // pred_region
    _
  $region45: #{unfolding_flow_forward.1} parent=0 // pred_fallthru
    _
  // Predicated region
  $region46: #{unfolding_flow_forward.1} parent=0 // pred_check
    _
  $region47: #{unfolding_flow_forward.1} parent=0 // pred_check_branch
    %45 = sbr.rel (0) target = $region49
  $region48: #{unfolding_flow_forward.1} parent=0 // pred_region
    _
  $region49: #{unfolding_flow_forward.1} parent=0 // pred_fallthru
    _
  // Predicated region
  $region50: #{unfolding_flow_forward.1} parent=0 // pred_check
    _
  $region51: #{unfolding_flow_forward.1} parent=0 // pred_check_branch
    %47 = sbr.rel (0) target = $region53
  $region52: #{unfolding_flow_forward.1} parent=0 // pred_region
    _
  $region53: #{unfolding_flow_forward.1} parent=0 // pred_fallthru
    _
  // Predicated region
  $region54: #{unfolding_flow_forward.1} parent=0 // pred_check
    _
  $region55: #{unfolding_flow_forward.1} parent=0 // pred_check_branch
    %49 = sbr.rel (0) target = $region57
  $region56: #{unfolding_flow_forward.1} parent=0 // pred_region
    _
  $region57: #{unfolding_flow_forward.1} parent=0 // pred_fallthru
    _
  // Predicated region
  $region58: #{unfolding_flow_forward.1} parent=0 // pred_check
    _
  $region59: #{unfolding_flow_forward.1} parent=0 // pred_check_branch
    %51 = sbr.rel (0) target = $region61
  $region60: #{unfolding_flow_forward.1} parent=0 // pred_region
    _
  $region61: #{unfolding_flow_forward.1} parent=0 // pred_fallthru
    _
  // Predicated region
  $region62: #{unfolding_flow_forward.1} parent=0 // pred_check
    _
  $region63: #{unfolding_flow_forward.1} parent=0 // pred_check_branch
    %53 = sbr.rel (0) target = $region65
  $region64: #{unfolding_flow_forward.1} parent=0 // pred_region
    _
  $region65: #{unfolding_flow_forward.1} parent=0 // pred_fallthru
    _
  // Predicated region
  $region66: #{unfolding_flow_forward.1} parent=0 // pred_check
    _
  $region67: #{unfolding_flow_forward.1} parent=0 // pred_check_branch
    %55 = sbr.rel (0) target = $region69
  $region68: #{unfolding_flow_forward.1} parent=0 // pred_region
    _
  $region69: #{unfolding_flow_forward.1} parent=0 // pred_fallthru
    _
  %v56 = vld [vmem:[%s0] sm:$0xff]
  %v57 = vld [vmem:[%s0 + $0x8] sm:$0xff]
  %v58 = vld [vmem:[%s0 + $0x10] sm:$0xff]
  %v59 = vld [vmem:[%s0 + $0x18] sm:$0xff]
  %v60 = vld [vmem:[%s0 + $0x20] sm:$0xff]
  %v61 = vld [vmem:[%s0 + $0x28] sm:$0xff]
  %v62 = vld [vmem:[%s0 + $0x30] sm:$0xff]
  %v63 = vld [vmem:[%s0 + $0x38] sm:$0xff]
  %v64 = vld [vmem:[%s5] sm:$0x3f]
  %vm65 = vcmask 48128
  %v67 = vsel %vm65, %v56, 0
  %v70 = vsel %vm65, %v57, 0
  %v73 = vsel %vm65, %v58, 0
  %v76 = vsel %vm65, %v59, 0
  %v79 = vsel %vm65, %v60, 0
  %v82 = vsel %vm65, %v61, 0
  %v85 = vsel %vm65, %v62, 0
  %v88 = vsel %vm65, %v63, 0
  %vm90 = vcmask 1045504
  %v92 = vsel %vm90, %v64, 0
  %94 = vmatprep.subr.mxu0 0.0
  %95 = vmatpush1.msra.mxu0 %v92
  %96 = vmatprep.subr.mxu0 0.0
  %97 = vmatpush1.msra.mxu0 0.0
  %98 = vmatprep.subr.mxu0 0.0
  %99 = vmatpush1.msra.mxu0 0.0
  %100 = vmatprep.subr.mxu0 0.0
  %101 = vmatpush1.msra.mxu0 0.0
  %102 = vmatprep.subr.mxu0 0.0
  %103 = vmatpush1.msra.mxu0 0.0
  %104 = vmatprep.subr.mxu0 0.0
  %105 = vmatpush1.msra.mxu0 0.0
  %106 = vmatprep.subr.mxu0 0.0
  %107 = vmatpush1.msra.mxu0 0.0
  %108 = vmatprep.subr.mxu0 0.0
  %109 = vmatpush1.msra.mxu0 0.0
  %110 = vmatprep.subr.mxu0 0.0
  %111 = vmatpush1.msra.mxu0 0.0
  %112 = vmatprep.subr.mxu0 0.0
  %113 = vmatpush1.msra.mxu0 0.0
  %114 = vmatprep.subr.mxu0 0.0
  %115 = vmatpush1.msra.mxu0 0.0
  %116 = vmatprep.subr.mxu0 0.0
  %117 = vmatpush1.msra.mxu0 0.0
  %118 = vmatprep.subr.mxu0 0.0
  %119 = vmatpush1.msra.mxu0 0.0
  %120 = vmatprep.subr.mxu0 0.0
  %121 = vmatpush1.msra.mxu0 0.0
  %122 = vmatprep.subr.mxu0 0.0
  %123 = vmatpush1.msra.mxu0 0.0
  %124 = vmatprep.subr.mxu0 0.0
  %125 = vmatpush1.msra.mxu0 0.0
  %126 = vmatprep.subr.mxu0 0.0
  %127 = vmatpush1.msra.mxu0 0.0
  %128 = vmatprep.subr.mxu0 0.0
  %129 = vmatpush1.msra.mxu0 0.0
  %130 = vmatprep.subr.mxu0 0.0
  %131 = vmatpush1.msra.mxu0 0.0
  %132 = vmatprep.subr.mxu0 0.0
  %133 = vmatpush1.msra.mxu0 0.0
  %134 = vmatprep.subr.mxu0 0.0
  %135 = vmatpush1.msra.mxu0 0.0
  %136 = vmatprep.subr.mxu0 0.0
  %137 = vmatpush1.msra.mxu0 0.0
  %138 = vmatprep.subr.mxu0 0.0
  %139 = vmatpush1.msra.mxu0 0.0
  %140 = vmatprep.subr.mxu0 0.0
  %141 = vmatpush1.msra.mxu0 0.0
  %142 = vmatprep.subr.mxu0 0.0
  %143 = vmatpush1.msra.mxu0 0.0
  %144 = vmatprep.subr.mxu0 0.0
  %145 = vmatpush1.msra.mxu0 0.0
  %146 = vmatprep.subr.mxu0 0.0
  %147 = vmatpush1.msra.mxu0 0.0
  %148 = vmatprep.subr.mxu0 0.0
  %149 = vmatpush1.msra.mxu0 0.0
  %150 = vmatprep.subr.mxu0 0.0
  %151 = vmatpush1.msra.mxu0 0.0
  %152 = vmatprep.subr.mxu0 0.0
  %153 = vmatpush1.msra.mxu0 0.0
  %154 = vmatprep.subr.mxu0 0.0
  %155 = vmatpush1.msra.mxu0 0.0
  %156 = vmatprep.subr.mxu0 0.0
  %157 = vmatpush1.msra.mxu0 0.0
  %158 = vmatprep.mubr.f32.mxu0 0.0
  %159 = vmatmul.mubr.f32.gmra.mrb[0].mxu0 %v67
  %v160 = vpop.f32.mrb[0].mxu0
  %v161 = vadd.f32 0.0, %v160
  %v162 = vpop.f32.mrb[0].mxu0
  %163 = vmatprep.mubr.f32.mxu0 0.0
  %164 = vmatmul.mubr.f32.gmra.mrb[0].mxu0 %v70
  %v165 = vpop.f32.mrb[0].mxu0
  %v166 = vadd.f32 0.0, %v165
  %v167 = vpop.f32.mrb[0].mxu0
  %168 = vmatprep.mubr.f32.mxu0 0.0
  %169 = vmatmul.mubr.f32.gmra.mrb[0].mxu0 %v73
  %v170 = vpop.f32.mrb[0].mxu0
  %v171 = vadd.f32 0.0, %v170
  %v172 = vpop.f32.mrb[0].mxu0
  %173 = vmatprep.mubr.f32.mxu0 0.0
  %174 = vmatmul.mubr.f32.gmra.mrb[0].mxu0 %v76
  %v175 = vpop.f32.mrb[0].mxu0
  %v176 = vadd.f32 0.0, %v175
  %v177 = vpop.f32.mrb[0].mxu0
  %178 = vmatprep.mubr.f32.mxu0 0.0
  %179 = vmatmul.mubr.f32.gmra.mrb[0].mxu0 %v79
  %v180 = vpop.f32.mrb[0].mxu0
  %v181 = vadd.f32 0.0, %v180
  %v182 = vpop.f32.mrb[0].mxu0
  %183 = vmatprep.mubr.f32.mxu0 0.0
  %184 = vmatmul.mubr.f32.gmra.mrb[0].mxu0 %v82
  %v185 = vpop.f32.mrb[0].mxu0
  %v186 = vadd.f32 0.0, %v185
  %v187 = vpop.f32.mrb[0].mxu0
  %188 = vmatprep.mubr.f32.mxu0 0.0
  %189 = vmatmul.mubr.f32.gmra.mrb[0].mxu0 %v85
  %v190 = vpop.f32.mrb[0].mxu0
  %v191 = vadd.f32 0.0, %v190
  %v192 = vpop.f32.mrb[0].mxu0
  %193 = vmatprep.mubr.f32.mxu0 0.0
  %194 = vmatmul.mubr.f32.gmra.mrb[0].mxu0 %v88
  %v195 = vpop.f32.mrb[0].mxu0
  %v196 = vadd.f32 0.0, %v195
  %v197 = vpop.f32.mrb[0].mxu0
  %198 = vdwg.mxu0
  %v199 = vmul.f32 %v161, 0.5
  %v200 = vmul.f32 %v166, 0.5
  %v201 = vmul.f32 %v171, 0.5
  %v202 = vmul.f32 %v176, 0.5
  %v203 = vmul.f32 %v181, 0.5
  %v204 = vmul.f32 %v186, 0.5
  %v205 = vmul.f32 %v191, 0.5
  %v206 = vmul.f32 %v196, 0.5
  %v207 = vmul.f32 %v161, 0.044715
  %v208 = vmul.f32 %v166, 0.044715
  %v209 = vmul.f32 %v171, 0.044715
  %v210 = vmul.f32 %v176, 0.044715
  %v211 = vmul.f32 %v181, 0.044715
  %v212 = vmul.f32 %v186, 0.044715
  %v213 = vmul.f32 %v191, 0.044715
  %v214 = vmul.f32 %v196, 0.044715
  %v215 = vmul.f32 %v207, %v161
  %v216 = vmul.f32 %v208, %v166
  %v217 = vmul.f32 %v209, %v171
  %v218 = vmul.f32 %v210, %v176
  %v219 = vmul.f32 %v211, %v181
  %v220 = vmul.f32 %v212, %v186
  %v221 = vmul.f32 %v213, %v191
  %v222 = vmul.f32 %v214, %v196
  %v223 = vmul.f32 %v215, %v161
  %v224 = vmul.f32 %v216, %v166
  %v225 = vmul.f32 %v217, %v171
  %v226 = vmul.f32 %v218, %v176
  %v227 = vmul.f32 %v219, %v181
  %v228 = vmul.f32 %v220, %v186
  %v229 = vmul.f32 %v221, %v191
  %v230 = vmul.f32 %v222, %v196
  %v231 = vadd.f32 %v161, %v223
  %v232 = vadd.f32 %v166, %v224
  %v233 = vadd.f32 %v171, %v225
  %v234 = vadd.f32 %v176, %v226
  %v235 = vadd.f32 %v181, %v227
  %v236 = vadd.f32 %v186, %v228
  %v237 = vadd.f32 %v191, %v229
  %v238 = vadd.f32 %v196, %v230
  %v239 = vmul.f32 %v231, 0.7978846
  %v240 = vmul.f32 %v232, 0.7978846
  %v241 = vmul.f32 %v233, 0.7978846
  %v242 = vmul.f32 %v234, 0.7978846
  %v243 = vmul.f32 %v235, 0.7978846
  %v244 = vmul.f32 %v236, 0.7978846
  %v245 = vmul.f32 %v237, 0.7978846
  %v246 = vmul.f32 %v238, 0.7978846
  %v247 = vtanh.pop %v239
  %v248 = vtanh.pop %v240
  %v249 = vtanh.pop %v241
  %v250 = vtanh.pop %v242
  %v251 = vtanh.pop %v243
  %v252 = vtanh.pop %v244
  %v253 = vtanh.pop %v245
  %v254 = vtanh.pop %v246
  %v255 = vadd.f32 %v247, 1.0
  %v256 = vadd.f32 %v248, 1.0
  %v257 = vadd.f32 %v249, 1.0
  %v258 = vadd.f32 %v250, 1.0
  %v259 = vadd.f32 %v251, 1.0
  %v260 = vadd.f32 %v252, 1.0
  %v261 = vadd.f32 %v253, 1.0
  %v262 = vadd.f32 %v254, 1.0
  %v263 = vmul.f32 %v199, %v255
  %v264 = vmul.f32 %v200, %v256
  %v265 = vmul.f32 %v201, %v257
  %v266 = vmul.f32 %v202, %v258
  %v267 = vmul.f32 %v203, %v259
  %v268 = vmul.f32 %v204, %v260
  %v269 = vmul.f32 %v205, %v261
  %v270 = vmul.f32 %v206, %v262
  %v271 = vld [vmem:[%s1] sm:$0xff]
  %v272 = vld [vmem:[%s1 + $0x8] sm:$0xff]
  %v273 = vld [vmem:[%s1 + $0x10] sm:$0xff]
  %v274 = vld [vmem:[%s1 + $0x18] sm:$0xff]
  %v275 = vld [vmem:[%s1 + $0x20] sm:$0xff]
  %v276 = vld [vmem:[%s1 + $0x28] sm:$0xff]
  %v277 = vld [vmem:[%s1 + $0x30] sm:$0xff]
  %v278 = vld [vmem:[%s1 + $0x38] sm:$0xff]
  %280 = vset.pattern.permute.xlu0 0
  %281 = vperm.xlu0 %280, %v271
  %v282 = vpop.permute.xlu0 %281
  %285 = vset.pattern.permute.xlu0 0
  %286 = vperm.xlu0 %285, %v272
  %v287 = vpop.permute.xlu0 %286
  %290 = vset.pattern.permute.xlu0 0
  %291 = vperm.xlu0 %290, %v273
  %v292 = vpop.permute.xlu0 %291
  %295 = vset.pattern.permute.xlu0 0
  %296 = vperm.xlu0 %295, %v274
  %v297 = vpop.permute.xlu0 %296
  %300 = vset.pattern.permute.xlu0 0
  %301 = vperm.xlu0 %300, %v275
  %v302 = vpop.permute.xlu0 %301
  %305 = vset.pattern.permute.xlu0 0
  %306 = vperm.xlu0 %305, %v276
  %v307 = vpop.permute.xlu0 %306
  %310 = vset.pattern.permute.xlu0 0
  %311 = vperm.xlu0 %310, %v277
  %v312 = vpop.permute.xlu0 %311
  %315 = vset.pattern.permute.xlu0 0
  %316 = vperm.xlu0 %315, %v278
  %v317 = vpop.permute.xlu0 %316
  %v319 = vmul.f32 %v263, %v282
  %v320 = vmul.f32 %v264, %v287
  %v321 = vmul.f32 %v265, %v292
  %v322 = vmul.f32 %v266, %v297
  %v323 = vmul.f32 %v267, %v302
  %v324 = vmul.f32 %v268, %v307
  %v325 = vmul.f32 %v269, %v312
  %v326 = vmul.f32 %v270, %v317
  %vm327 = vcmask 130048
  %v328 = vsel %vm327, %v319, 0.0
  %v329 = vrot.slane %v328, 4
  %v330 = vadd.f32 %v328, %v329
  %v331 = vrot.slane %v330, 2
  %v332 = vadd.f32 %v330, %v331
  %v333 = vrot.slane %v332, 1
  %v334 = vadd.f32 %v332, %v333
  %v335 = vsel %vm327, %v320, 0.0
  %v336 = vrot.slane %v335, 4
  %v337 = vadd.f32 %v335, %v336
  %v338 = vrot.slane %v337, 2
  %v339 = vadd.f32 %v337, %v338
  %v340 = vrot.slane %v339, 1
  %v341 = vadd.f32 %v339, %v340
  %v342 = vsel %vm327, %v321, 0.0
  %v343 = vrot.slane %v342, 4
  %v344 = vadd.f32 %v342, %v343
  %v345 = vrot.slane %v344, 2
  %v346 = vadd.f32 %v344, %v345
  %v347 = vrot.slane %v346, 1
  %v348 = vadd.f32 %v346, %v347
  %v349 = vsel %vm327, %v322, 0.0
  %v350 = vrot.slane %v349, 4
  %v351 = vadd.f32 %v349, %v350
  %v352 = vrot.slane %v351, 2
  %v353 = vadd.f32 %v351, %v352
  %v354 = vrot.slane %v353, 1
  %v355 = vadd.f32 %v353, %v354
  %v356 = vsel %vm327, %v323, 0.0
  %v357 = vrot.slane %v356, 4
  %v358 = vadd.f32 %v356, %v357
  %v359 = vrot.slane %v358, 2
  %v360 = vadd.f32 %v358, %v359
  %v361 = vrot.slane %v360, 1
  %v362 = vadd.f32 %v360, %v361
  %v363 = vsel %vm327, %v324, 0.0
  %v364 = vrot.slane %v363, 4
  %v365 = vadd.f32 %v363, %v364
  %v366 = vrot.slane %v365, 2
  %v367 = vadd.f32 %v365, %v366
  %v368 = vrot.slane %v367, 1
  %v369 = vadd.f32 %v367, %v368
  %v370 = vsel %vm327, %v325, 0.0
  %v371 = vrot.slane %v370, 4
  %v372 = vadd.f32 %v370, %v371
  %v373 = vrot.slane %v372, 2
  %v374 = vadd.f32 %v372, %v373
  %v375 = vrot.slane %v374, 1
  %v376 = vadd.f32 %v374, %v375
  %v377 = vsel %vm327, %v326, 0.0
  %v378 = vrot.slane %v377, 4
  %v379 = vadd.f32 %v377, %v378
  %v380 = vrot.slane %v379, 2
  %v381 = vadd.f32 %v379, %v380
  %v382 = vrot.slane %v381, 1
  %v383 = vadd.f32 %v381, %v382
  %vm384 = vcmask 7168
  %v385 = vsel %vm384, %v271, 0.0
  %v386 = vrot.slane %v385, 4
  %v387 = vadd.f32 %v385, %v386
  %v388 = vrot.slane %v387, 2
  %v389 = vadd.f32 %v387, %v388
  %v390 = vrot.slane %v389, 1
  %v391 = vadd.f32 %v389, %v390
  %v392 = vsel %vm384, %v272, 0.0
  %v393 = vrot.slane %v392, 4
  %v394 = vadd.f32 %v392, %v393
  %v395 = vrot.slane %v394, 2
  %v396 = vadd.f32 %v394, %v395
  %v397 = vrot.slane %v396, 1
  %v398 = vadd.f32 %v396, %v397
  %v399 = vsel %vm384, %v273, 0.0
  %v400 = vrot.slane %v399, 4
  %v401 = vadd.f32 %v399, %v400
  %v402 = vrot.slane %v401, 2
  %v403 = vadd.f32 %v401, %v402
  %v404 = vrot.slane %v403, 1
  %v405 = vadd.f32 %v403, %v404
  %v406 = vsel %vm384, %v274, 0.0
  %v407 = vrot.slane %v406, 4
  %v408 = vadd.f32 %v406, %v407
  %v409 = vrot.slane %v408, 2
  %v410 = vadd.f32 %v408, %v409
  %v411 = vrot.slane %v410, 1
  %v412 = vadd.f32 %v410, %v411
  %v413 = vsel %vm384, %v275, 0.0
  %v414 = vrot.slane %v413, 4
  %v415 = vadd.f32 %v413, %v414
  %v416 = vrot.slane %v415, 2
  %v417 = vadd.f32 %v415, %v416
  %v418 = vrot.slane %v417, 1
  %v419 = vadd.f32 %v417, %v418
  %v420 = vsel %vm384, %v276, 0.0
  %v421 = vrot.slane %v420, 4
  %v422 = vadd.f32 %v420, %v421
  %v423 = vrot.slane %v422, 2
  %v424 = vadd.f32 %v422, %v423
  %v425 = vrot.slane %v424, 1
  %v426 = vadd.f32 %v424, %v425
  %v427 = vsel %vm384, %v277, 0.0
  %v428 = vrot.slane %v427, 4
  %v429 = vadd.f32 %v427, %v428
  %v430 = vrot.slane %v429, 2
  %v431 = vadd.f32 %v429, %v430
  %v432 = vrot.slane %v431, 1
  %v433 = vadd.f32 %v431, %v432
  %v434 = vsel %vm384, %v278, 0.0
  %v435 = vrot.slane %v434, 4
  %v436 = vadd.f32 %v434, %v435
  %v437 = vrot.slane %v436, 2
  %v438 = vadd.f32 %v436, %v437
  %v439 = vrot.slane %v438, 1
  %v440 = vadd.f32 %v438, %v439
  %v441 = vld [vmem:[%s3] sm:$0xff]
  %v442 = vld [vmem:[%s2] sm:$0xff]
  %v443 = vld [vmem:[%s6] sm:$0x7]
  %vm444 = vcmask 23552
  %v446 = vsel %vm444, %v442, 0
  %vm448 = vcmask 1042432
  %v450 = vsel %vm448, %v443, 0
  %452 = vmatprep.subr.mxu0 0.0
  %453 = vmatpush1.msra.mxu0 %v450
  %454 = vmatprep.subr.mxu0 0.0
  %455 = vmatpush1.msra.mxu0 0.0
  %456 = vmatprep.subr.mxu0 0.0
  %457 = vmatpush1.msra.mxu0 0.0
  %458 = vmatprep.subr.mxu0 0.0
  %459 = vmatpush1.msra.mxu0 0.0
  %460 = vmatprep.subr.mxu0 0.0
  %461 = vmatpush1.msra.mxu0 0.0
  %462 = vmatprep.subr.mxu0 0.0
  %463 = vmatpush1.msra.mxu0 0.0
  %464 = vmatprep.subr.mxu0 0.0
  %465 = vmatpush1.msra.mxu0 0.0
  %466 = vmatprep.subr.mxu0 0.0
  %467 = vmatpush1.msra.mxu0 0.0
  %468 = vmatprep.subr.mxu0 0.0
  %469 = vmatpush1.msra.mxu0 0.0
  %470 = vmatprep.subr.mxu0 0.0
  %471 = vmatpush1.msra.mxu0 0.0
  %472 = vmatprep.subr.mxu0 0.0
  %473 = vmatpush1.msra.mxu0 0.0
  %474 = vmatprep.subr.mxu0 0.0
  %475 = vmatpush1.msra.mxu0 0.0
  %476 = vmatprep.subr.mxu0 0.0
  %477 = vmatpush1.msra.mxu0 0.0
  %478 = vmatprep.subr.mxu0 0.0
  %479 = vmatpush1.msra.mxu0 0.0
  %480 = vmatprep.subr.mxu0 0.0
  %481 = vmatpush1.msra.mxu0 0.0
  %482 = vmatprep.subr.mxu0 0.0
  %483 = vmatpush1.msra.mxu0 0.0
  %484 = vmatprep.subr.mxu0 0.0
  %485 = vmatpush1.msra.mxu0 0.0
  %486 = vmatprep.subr.mxu0 0.0
  %487 = vmatpush1.msra.mxu0 0.0
  %488 = vmatprep.subr.mxu0 0.0
  %489 = vmatpush1.msra.mxu0 0.0
  %490 = vmatprep.subr.mxu0 0.0
  %491 = vmatpush1.msra.mxu0 0.0
  %492 = vmatprep.subr.mxu0 0.0
  %493 = vmatpush1.msra.mxu0 0.0
  %494 = vmatprep.subr.mxu0 0.0
  %495 = vmatpush1.msra.mxu0 0.0
  %496 = vmatprep.subr.mxu0 0.0
  %497 = vmatpush1.msra.mxu0 0.0
  %498 = vmatprep.subr.mxu0 0.0
  %499 = vmatpush1.msra.mxu0 0.0
  %500 = vmatprep.subr.mxu0 0.0
  %501 = vmatpush1.msra.mxu0 0.0
  %502 = vmatprep.subr.mxu0 0.0
  %503 = vmatpush1.msra.mxu0 0.0
  %504 = vmatprep.subr.mxu0 0.0
  %505 = vmatpush1.msra.mxu0 0.0
  %506 = vmatprep.subr.mxu0 0.0
  %507 = vmatpush1.msra.mxu0 0.0
  %508 = vmatprep.subr.mxu0 0.0
  %509 = vmatpush1.msra.mxu0 0.0
  %510 = vmatprep.subr.mxu0 0.0
  %511 = vmatpush1.msra.mxu0 0.0
  %512 = vmatprep.subr.mxu0 0.0
  %513 = vmatpush1.msra.mxu0 0.0
  %514 = vmatprep.subr.mxu0 0.0
  %515 = vmatpush1.msra.mxu0 0.0
  %516 = vmatprep.mubr.f32.mxu0 0.0
  %517 = vmatmul.mubr.f32.gmra.mrb[0].mxu0 %v446
  %v518 = vpop.f32.mrb[0].mxu0
  %v519 = vadd.f32 0.0, %v518
  %v520 = vpop.f32.mrb[0].mxu0
  %521 = vdwg.mxu0
  %v522 = vmul.f32 %v519, 0.5
  %v523 = vmul.f32 %v519, 0.044715
  %v524 = vmul.f32 %v523, %v519
  %v525 = vmul.f32 %v524, %v519
  %v526 = vadd.f32 %v519, %v525
  %v527 = vmul.f32 %v526, 0.7978846
  %v528 = vtanh.pop %v527
  %v529 = vadd.f32 %v528, 1.0
  %v530 = vmul.f32 %v522, %v529
  %v532 = vrot.slane %v441, 1
  %v533 = vrot.slane %v441, 2
  %v534 = vrot.slane %v441, 3
  %v535 = vrot.slane %v441, 4
  %v536 = vrot.slane %v441, 5
  %v537 = vrot.slane %v441, 6
  %v538 = vrot.slane %v441, 7
  %v547 = vadd.f32 %v391, %v441
  %v548 = vadd.f32 %v398, %v532
  %v549 = vadd.f32 %v405, %v533
  %v550 = vadd.f32 %v412, %v534
  %v551 = vadd.f32 %v419, %v535
  %v552 = vadd.f32 %v426, %v536
  %v553 = vadd.f32 %v433, %v537
  %v554 = vadd.f32 %v440, %v538
  %v555 = vmax.f32 %v547, 1.0
  %v556 = vmax.f32 %v548, 1.0
  %v557 = vmax.f32 %v549, 1.0
  %v558 = vmax.f32 %v550, 1.0
  %v559 = vmax.f32 %v551, 1.0
  %v560 = vmax.f32 %v552, 1.0
  %v561 = vmax.f32 %v553, 1.0
  %v562 = vmax.f32 %v554, 1.0
  %563 = vset.pattern.permute.xlu0 0
  %564 = vperm.xlu0 %563, %v441
  %v565 = vpop.permute.xlu0 %564
  %v567 = vmul.f32 %v565, %v530
  %v569 = vrot.slane %v567, 1
  %v570 = vrot.slane %v567, 2
  %v571 = vrot.slane %v567, 3
  %v572 = vrot.slane %v567, 4
  %v573 = vrot.slane %v567, 5
  %v574 = vrot.slane %v567, 6
  %v575 = vrot.slane %v567, 7
  %v584 = vadd.f32 %v334, %v567
  %v585 = vadd.f32 %v341, %v569
  %v586 = vadd.f32 %v348, %v570
  %v587 = vadd.f32 %v355, %v571
  %v588 = vadd.f32 %v362, %v572
  %v589 = vadd.f32 %v369, %v573
  %v590 = vadd.f32 %v376, %v574
  %v591 = vadd.f32 %v383, %v575
  %v592 = vrcp.pop %v555
  %v593 = vrcp.pop %v556
  %v594 = vrcp.pop %v557
  %v595 = vrcp.pop %v558
  %v596 = vrcp.pop %v559
  %v597 = vrcp.pop %v560
  %v598 = vrcp.pop %v561
  %v599 = vrcp.pop %v562
  %601 = vset.pattern.permute.xlu0 0
  %602 = vperm.xlu0 %601, %v592
  %v603 = vpop.permute.xlu0 %602
  %606 = vset.pattern.permute.xlu0 0
  %607 = vperm.xlu0 %606, %v593
  %v608 = vpop.permute.xlu0 %607
  %611 = vset.pattern.permute.xlu0 0
  %612 = vperm.xlu0 %611, %v594
  %v613 = vpop.permute.xlu0 %612
  %616 = vset.pattern.permute.xlu0 0
  %617 = vperm.xlu0 %616, %v595
  %v618 = vpop.permute.xlu0 %617
  %621 = vset.pattern.permute.xlu0 0
  %622 = vperm.xlu0 %621, %v596
  %v623 = vpop.permute.xlu0 %622
  %626 = vset.pattern.permute.xlu0 0
  %627 = vperm.xlu0 %626, %v597
  %v628 = vpop.permute.xlu0 %627
  %631 = vset.pattern.permute.xlu0 0
  %632 = vperm.xlu0 %631, %v598
  %v633 = vpop.permute.xlu0 %632
  %636 = vset.pattern.permute.xlu0 0
  %637 = vperm.xlu0 %636, %v599
  %v638 = vpop.permute.xlu0 %637
  %v640 = vmul.f32 %v584, %v603
  %v641 = vmul.f32 %v585, %v608
  %v642 = vmul.f32 %v586, %v613
  %v643 = vmul.f32 %v587, %v618
  %v644 = vmul.f32 %v588, %v623
  %v645 = vmul.f32 %v589, %v628
  %v646 = vmul.f32 %v590, %v633
  %v647 = vmul.f32 %v591, %v638
  %v648 = vld [vmem:[%s7] sm:$0xff]
  %v649 = vld [vmem:[%s7 + $0x8] sm:$0xff]
  %v650 = vld [vmem:[%s8] sm:$0x1]
  %v651 = vlaneseq
  %v652 = vshrl.u32 %v651, 7
  %v653 = vsub.s32 0, %v652
  %v654 = vrot.slane %v650, %v653
  %v663 = vrot.slane %v641, 7
  %vm664 = vcmask 1041409
  %v665 = vsel %vm664, %v663, %v640
  %v666 = vrot.slane %v642, 6
  %vm667 = vcmask 1042434
  %v668 = vsel %vm667, %v666, %v665
  %v669 = vrot.slane %v643, 5
  %vm670 = vcmask 1043459
  %v671 = vsel %vm670, %v669, %v668
  %v672 = vrot.slane %v644, 4
  %vm673 = vcmask 1044484
  %v674 = vsel %vm673, %v672, %v671
  %v675 = vrot.slane %v645, 3
  %vm676 = vcmask 1045509
  %v677 = vsel %vm676, %v675, %v674
  %v678 = vrot.slane %v646, 2
  %vm679 = vcmask 1046534
  %v680 = vsel %vm679, %v678, %v677
  %v681 = vrot.slane %v647, 1
  %vm682 = vcmask 1047559
  %v683 = vsel %vm682, %v681, %v680
  %v684 = vsel %vm327, %v683, 0
  %686 = vmatprep.subr.mxu0 0.0
  %687 = vmatpush1.msra.mxu0 %v648
  %688 = vmatprep.subr.mxu0 0.0
  %689 = vmatpush1.msra.mxu0 %v649
  %690 = vmatprep.subr.mxu0 0.0
  %691 = vmatpush1.msra.mxu0 0.0
  %692 = vmatprep.subr.mxu0 0.0
  %693 = vmatpush1.msra.mxu0 0.0
  %694 = vmatprep.subr.mxu0 0.0
  %695 = vmatpush1.msra.mxu0 0.0
  %696 = vmatprep.subr.mxu0 0.0
  %697 = vmatpush1.msra.mxu0 0.0
  %698 = vmatprep.subr.mxu0 0.0
  %699 = vmatpush1.msra.mxu0 0.0
  %700 = vmatprep.subr.mxu0 0.0
  %701 = vmatpush1.msra.mxu0 0.0
  %702 = vmatprep.subr.mxu0 0.0
  %703 = vmatpush1.msra.mxu0 0.0
  %704 = vmatprep.subr.mxu0 0.0
  %705 = vmatpush1.msra.mxu0 0.0
  %706 = vmatprep.subr.mxu0 0.0
  %707 = vmatpush1.msra.mxu0 0.0
  %708 = vmatprep.subr.mxu0 0.0
  %709 = vmatpush1.msra.mxu0 0.0
  %710 = vmatprep.subr.mxu0 0.0
  %711 = vmatpush1.msra.mxu0 0.0
  %712 = vmatprep.subr.mxu0 0.0
  %713 = vmatpush1.msra.mxu0 0.0
  %714 = vmatprep.subr.mxu0 0.0
  %715 = vmatpush1.msra.mxu0 0.0
  %716 = vmatprep.subr.mxu0 0.0
  %717 = vmatpush1.msra.mxu0 0.0
  %718 = vmatprep.subr.mxu0 0.0
  %719 = vmatpush1.msra.mxu0 0.0
  %720 = vmatprep.subr.mxu0 0.0
  %721 = vmatpush1.msra.mxu0 0.0
  %722 = vmatprep.subr.mxu0 0.0
  %723 = vmatpush1.msra.mxu0 0.0
  %724 = vmatprep.subr.mxu0 0.0
  %725 = vmatpush1.msra.mxu0 0.0
  %726 = vmatprep.subr.mxu0 0.0
  %727 = vmatpush1.msra.mxu0 0.0
  %728 = vmatprep.subr.mxu0 0.0
  %729 = vmatpush1.msra.mxu0 0.0
  %730 = vmatprep.subr.mxu0 0.0
  %731 = vmatpush1.msra.mxu0 0.0
  %732 = vmatprep.subr.mxu0 0.0
  %733 = vmatpush1.msra.mxu0 0.0
  %734 = vmatprep.subr.mxu0 0.0
  %735 = vmatpush1.msra.mxu0 0.0
  %736 = vmatprep.subr.mxu0 0.0
  %737 = vmatpush1.msra.mxu0 0.0
  %738 = vmatprep.subr.mxu0 0.0
  %739 = vmatpush1.msra.mxu0 0.0
  %740 = vmatprep.subr.mxu0 0.0
  %741 = vmatpush1.msra.mxu0 0.0
  %742 = vmatprep.subr.mxu0 0.0
  %743 = vmatpush1.msra.mxu0 0.0
  %744 = vmatprep.subr.mxu0 0.0
  %745 = vmatpush1.msra.mxu0 0.0
  %746 = vmatprep.subr.mxu0 0.0
  %747 = vmatpush1.msra.mxu0 0.0
  %748 = vmatprep.subr.mxu0 0.0
  %749 = vmatpush1.msra.mxu0 0.0
  %750 = vmatprep.mubr.f32.mxu0 0.0
  %751 = vmatmul.mubr.f32.gmra.mrb[0].mxu0 %v684
  %v752 = vpop.f32.mrb[0].mxu0
  %v753 = vadd.f32 %v654, %v752
  %v754 = vpop.f32.mrb[0].mxu0
  %755 = vdwg.mxu0
  %v756 = vmul.f32 %v753, 0.5
  %v757 = vmul.f32 %v753, 0.044715
  %v758 = vmul.f32 %v757, %v753
  %v759 = vmul.f32 %v758, %v753
  %v760 = vadd.f32 %v753, %v759
  %v761 = vmul.f32 %v760, 0.7978846
  %v762 = vtanh.pop %v761
  %v763 = vadd.f32 %v762, 1.0
  %v764 = vmul.f32 %v756, %v763
  %s765 = scalar_lea.vmem %s7, 16
  %v766 = vld [vmem:[%s765] sm:$0xff]
  %v767 = vld [vmem:[%s765 + $0x8] sm:$0xff]
  %v768 = vld [vmem:[%s8 + $0x1] sm:$0x1]
  %v769 = vlaneseq
  %v770 = vshrl.u32 %v769, 7
  %v771 = vsub.s32 0, %v770
  %v772 = vrot.slane %v768, %v771
  %v774 = vsel %vm327, %v764, 0
  %776 = vmatprep.subr.mxu0 0.0
  %777 = vmatpush1.msra.mxu0 %v766
  %778 = vmatprep.subr.mxu0 0.0
  %779 = vmatpush1.msra.mxu0 %v767
  %780 = vmatprep.subr.mxu0 0.0
  %781 = vmatpush1.msra.mxu0 0.0
  %782 = vmatprep.subr.mxu0 0.0
  %783 = vmatpush1.msra.mxu0 0.0
  %784 = vmatprep.subr.mxu0 0.0
  %785 = vmatpush1.msra.mxu0 0.0
  %786 = vmatprep.subr.mxu0 0.0
  %787 = vmatpush1.msra.mxu0 0.0
  %788 = vmatprep.subr.mxu0 0.0
  %789 = vmatpush1.msra.mxu0 0.0
  %790 = vmatprep.subr.mxu0 0.0
  %791 = vmatpush1.msra.mxu0 0.0
  %792 = vmatprep.subr.mxu0 0.0
  %793 = vmatpush1.msra.mxu0 0.0
  %794 = vmatprep.subr.mxu0 0.0
  %795 = vmatpush1.msra.mxu0 0.0
  %796 = vmatprep.subr.mxu0 0.0
  %797 = vmatpush1.msra.mxu0 0.0
  %798 = vmatprep.subr.mxu0 0.0
  %799 = vmatpush1.msra.mxu0 0.0
  %800 = vmatprep.subr.mxu0 0.0
  %801 = vmatpush1.msra.mxu0 0.0
  %802 = vmatprep.subr.mxu0 0.0
  %803 = vmatpush1.msra.mxu0 0.0
  %804 = vmatprep.subr.mxu0 0.0
  %805 = vmatpush1.msra.mxu0 0.0
  %806 = vmatprep.subr.mxu0 0.0
  %807 = vmatpush1.msra.mxu0 0.0
  %808 = vmatprep.subr.mxu0 0.0
  %809 = vmatpush1.msra.mxu0 0.0
  %810 = vmatprep.subr.mxu0 0.0
  %811 = vmatpush1.msra.mxu0 0.0
  %812 = vmatprep.subr.mxu0 0.0
  %813 = vmatpush1.msra.mxu0 0.0
  %814 = vmatprep.subr.mxu0 0.0
  %815 = vmatpush1.msra.mxu0 0.0
  %816 = vmatprep.subr.mxu0 0.0
  %817 = vmatpush1.msra.mxu0 0.0
  %818 = vmatprep.subr.mxu0 0.0
  %819 = vmatpush1.msra.mxu0 0.0
  %820 = vmatprep.subr.mxu0 0.0
  %821 = vmatpush1.msra.mxu0 0.0
  %822 = vmatprep.subr.mxu0 0.0
  %823 = vmatpush1.msra.mxu0 0.0
  %824 = vmatprep.subr.mxu0 0.0
  %825 = vmatpush1.msra.mxu0 0.0
  %826 = vmatprep.subr.mxu0 0.0
  %827 = vmatpush1.msra.mxu0 0.0
  %828 = vmatprep.subr.mxu0 0.0
  %829 = vmatpush1.msra.mxu0 0.0
  %830 = vmatprep.subr.mxu0 0.0
  %831 = vmatpush1.msra.mxu0 0.0
  %832 = vmatprep.subr.mxu0 0.0
  %833 = vmatpush1.msra.mxu0 0.0
  %834 = vmatprep.subr.mxu0 0.0
  %835 = vmatpush1.msra.mxu0 0.0
  %836 = vmatprep.subr.mxu0 0.0
  %837 = vmatpush1.msra.mxu0 0.0
  %838 = vmatprep.subr.mxu0 0.0
  %839 = vmatpush1.msra.mxu0 0.0
  %840 = vmatprep.mubr.f32.mxu0 0.0
  %841 = vmatmul.mubr.f32.gmra.mrb[0].mxu0 %v774
  %v842 = vpop.f32.mrb[0].mxu0
  %v843 = vadd.f32 %v772, %v842
  %v844 = vpop.f32.mrb[0].mxu0
  %845 = vdwg.mxu0
  %v846 = vmul.f32 %v843, 0.5
  %v847 = vmul.f32 %v843, 0.044715
  %v848 = vmul.f32 %v847, %v843
  %v849 = vmul.f32 %v848, %v843
  %v850 = vadd.f32 %v843, %v849
  %v851 = vmul.f32 %v850, 0.7978846
  %v852 = vtanh.pop %v851
  %v853 = vadd.f32 %v852, 1.0
  %v854 = vmul.f32 %v846, %v853
  %v855 = vld [vmem:[%s9] sm:$0xff]
  %v856 = vld [vmem:[%s9 + $0x8] sm:$0xff]
  %v857 = vld [vmem:[%s10] sm:$0x1]
  %v859 = vlaneseq
  %v860 = vshrl.u32 %v859, 7
  %v861 = vsub.s32 0, %v860
  %v862 = vrot.slane %v857, %v861
  %v865 = vsel %vm327, %v854, 0
  %867 = vmatprep.subr.mxu0 0.0
  %868 = vmatpush1.msra.mxu0 %v855
  %869 = vmatprep.subr.mxu0 0.0
  %870 = vmatpush1.msra.mxu0 %v856
  %871 = vmatprep.subr.mxu0 0.0
  %872 = vmatpush1.msra.mxu0 0.0
  %873 = vmatprep.subr.mxu0 0.0
  %874 = vmatpush1.msra.mxu0 0.0
  %875 = vmatprep.subr.mxu0 0.0
  %876 = vmatpush1.msra.mxu0 0.0
  %877 = vmatprep.subr.mxu0 0.0
  %878 = vmatpush1.msra.mxu0 0.0
  %879 = vmatprep.subr.mxu0 0.0
  %880 = vmatpush1.msra.mxu0 0.0
  %881 = vmatprep.subr.mxu0 0.0
  %882 = vmatpush1.msra.mxu0 0.0
  %883 = vmatprep.subr.mxu0 0.0
  %884 = vmatpush1.msra.mxu0 0.0
  %885 = vmatprep.subr.mxu0 0.0
  %886 = vmatpush1.msra.mxu0 0.0
  %887 = vmatprep.subr.mxu0 0.0
  %888 = vmatpush1.msra.mxu0 0.0
  %889 = vmatprep.subr.mxu0 0.0
  %890 = vmatpush1.msra.mxu0 0.0
  %891 = vmatprep.subr.mxu0 0.0
  %892 = vmatpush1.msra.mxu0 0.0
  %893 = vmatprep.subr.mxu0 0.0
  %894 = vmatpush1.msra.mxu0 0.0
  %895 = vmatprep.subr.mxu0 0.0
  %896 = vmatpush1.msra.mxu0 0.0
  %897 = vmatprep.subr.mxu0 0.0
  %898 = vmatpush1.msra.mxu0 0.0
  %899 = vmatprep.subr.mxu0 0.0
  %900 = vmatpush1.msra.mxu0 0.0
  %901 = vmatprep.subr.mxu0 0.0
  %902 = vmatpush1.msra.mxu0 0.0
  %903 = vmatprep.subr.mxu0 0.0
  %904 = vmatpush1.msra.mxu0 0.0
  %905 = vmatprep.subr.mxu0 0.0
  %906 = vmatpush1.msra.mxu0 0.0
  %907 = vmatprep.subr.mxu0 0.0
  %908 = vmatpush1.msra.mxu0 0.0
  %909 = vmatprep.subr.mxu0 0.0
  %910 = vmatpush1.msra.mxu0 0.0
  %911 = vmatprep.subr.mxu0 0.0
  %912 = vmatpush1.msra.mxu0 0.0
  %913 = vmatprep.subr.mxu0 0.0
  %914 = vmatpush1.msra.mxu0 0.0
  %915 = vmatprep.subr.mxu0 0.0
  %916 = vmatpush1.msra.mxu0 0.0
  %917 = vmatprep.subr.mxu0 0.0
  %918 = vmatpush1.msra.mxu0 0.0
  %919 = vmatprep.subr.mxu0 0.0
  %920 = vmatpush1.msra.mxu0 0.0
  %921 = vmatprep.subr.mxu0 0.0
  %922 = vmatpush1.msra.mxu0 0.0
  %923 = vmatprep.subr.mxu0 0.0
  %924 = vmatpush1.msra.mxu0 0.0
  %925 = vmatprep.subr.mxu0 0.0
  %926 = vmatpush1.msra.mxu0 0.0
  %927 = vmatprep.subr.mxu0 0.0
  %928 = vmatpush1.msra.mxu0 0.0
  %929 = vmatprep.subr.mxu0 0.0
  %930 = vmatpush1.msra.mxu0 0.0
  %931 = vmatprep.mubr.f32.mxu0 0.0
  %932 = vmatmul.mubr.f32.gmra.mrb[0].mxu0 %v865
  %v933 = vpop.f32.mrb[0].mxu0
  %v934 = vadd.f32 %v862, %v933
  %v935 = vpop.f32.mrb[0].mxu0
  %936 = vdwg.mxu0
  %v937 = vlaneseq
  %v938 = vand.u32 %v937, 127
  %vm939 = vcmp.lt.s32.totalorder %v938, 10
  %vm940 = vcmp.lt.s32.totalorder %v938, 0
  %v941 = vsub.s32 0, %v938
  %v942 = vsel %vm940, %v941, %v938
  %v943 = vshrl.u32 %v942, 1
  %v944 = vand.u32 %v942, 1
  %v945 = vsub.s32 0, %v944
  %v946 = vsel %vm940, %v945, %v944
  %vm947 = vcmp.ne.s32.totalorder %v946, 0
  %vm948 = vcmp.lt.s32.totalorder %v946, 0
  %vm949 = vmand %vm948, %vm947
  %v950 = vadd.s32 %v946, 2
  %v951 = vsel %vm949, %v950, %v946
  %vm952 = vcmp.eq.s32.totalorder %v951, 0
  %vm953 = vmand %vm939, %vm952
  %v954 = vand.u32 2147483647, %v934
  %v955 = vsub.f32 0.0, %v954
  %v956 = vmul.f32 %v955, 1.442695
  %v957 = vpow.pop %v956
  %vm958 = vcmp.gt.f32.partialorder %v957, 0.41421357
  %v959 = vsub.f32 %v957, 1.0
  %v960 = vadd.f32 %v957, 1.0
  %v961 = vrcp.pop %v960
  %v962 = vmul.f32 %v959, %v961
  %v963 = vsel %vm958, %v962, %v957
  %v964 = vsel %vm958, 0.7853982, 0.0
  %v965 = vmul.f32 %v963, %v963
  %v966 = vmul.f32 %v965, 0.080537446
  %v967 = vsub.f32 %v966, 0.13877685
  %v968 = vmul.f32 %v967, %v965
  %v969 = vadd.f32 %v968, 0.19977711
  %v970 = vmul.f32 %v969, %v965
  %v971 = vsub.f32 %v970, 0.3333295
  %v972 = vmul.f32 %v971, %v965
  %v973 = vmul.f32 %v972, %v963
  %v974 = vadd.f32 %v973, %v963
  %v975 = vadd.f32 %v964, %v974
  %vm976 = vcmp.ge.f32.partialorder %v934, 0.0
  %v977 = vmul.f32 %v975, 2.0
  %v978 = vsub.f32 3.1415927, %v977
  %v979 = vsel %vm976, %v977, %v978
  %v980 = vsel %vm953, %v979, %v934
  %v981 = vld [vmem:[%s11] sm:$0xff]
  %v982 = vld [vmem:[%s11 + $0x8] sm:$0xff]
  %v983 = vld [vmem:[%s11 + $0x10] sm:$0xff]
  %v984 = vld [vmem:[%s11 + $0x18] sm:$0xff]
  %v985 = vld [vmem:[%s11 + $0x20] sm:$0xf]
  %v986 = vld [vmem:[%s11 + $0x28] sm:$0xf]
  %v987 = vld [vmem:[%s12] ss:$4 sm:$0x3]
  %v989 = vlaneseq
  %v990 = vshrl.u32 %v989, 7
  %v991 = vsub.s32 0, %v990
  %v992 = vrot.slane %v987, %v991
  %v993 = vlaneseq
  %v994 = vshrl.u32 %v993, 7
  %v995 = vsub.s32 1, %v994
  %v996 = vrot.slane %v987, %v995
  %vm999 = vcmask 162816
  %v1001 = vsel %vm999, %v980, 0
  %vm1003 = vcmask 1043456
  %v1005 = vsel %vm1003, %v985, 0
  %v1008 = vsel %vm1003, %v986, 0
  %1010 = vmatprep.subr.mxu0 %v982
  %1011 = vmatpush1.msra.mxu0 %v981
  %1012 = vmatprep.subr.mxu0 %v984
  %1013 = vmatpush1.msra.mxu0 %v983
  %1014 = vmatprep.subr.mxu0 %v1008
  %1015 = vmatpush1.msra.mxu0 %v1005
  %1016 = vmatprep.subr.mxu0 0.0
  %1017 = vmatpush1.msra.mxu0 0.0
  %1018 = vmatprep.subr.mxu0 0.0
  %1019 = vmatpush1.msra.mxu0 0.0
  %1020 = vmatprep.subr.mxu0 0.0
  %1021 = vmatpush1.msra.mxu0 0.0
  %1022 = vmatprep.subr.mxu0 0.0
  %1023 = vmatpush1.msra.mxu0 0.0
  %1024 = vmatprep.subr.mxu0 0.0
  %1025 = vmatpush1.msra.mxu0 0.0
  %1026 = vmatprep.subr.mxu0 0.0
  %1027 = vmatpush1.msra.mxu0 0.0
  %1028 = vmatprep.subr.mxu0 0.0
  %1029 = vmatpush1.msra.mxu0 0.0
  %1030 = vmatprep.subr.mxu0 0.0
  %1031 = vmatpush1.msra.mxu0 0.0
  %1032 = vmatprep.subr.mxu0 0.0
  %1033 = vmatpush1.msra.mxu0 0.0
  %1034 = vmatprep.subr.mxu0 0.0
  %1035 = vmatpush1.msra.mxu0 0.0
  %1036 = vmatprep.subr.mxu0 0.0
  %1037 = vmatpush1.msra.mxu0 0.0
  %1038 = vmatprep.subr.mxu0 0.0
  %1039 = vmatpush1.msra.mxu0 0.0
  %1040 = vmatprep.subr.mxu0 0.0
  %1041 = vmatpush1.msra.mxu0 0.0
  %1042 = vmatprep.subr.mxu0 0.0
  %1043 = vmatpush1.msra.mxu0 0.0
  %1044 = vmatprep.subr.mxu0 0.0
  %1045 = vmatpush1.msra.mxu0 0.0
  %1046 = vmatprep.subr.mxu0 0.0
  %1047 = vmatpush1.msra.mxu0 0.0
  %1048 = vmatprep.subr.mxu0 0.0
  %1049 = vmatpush1.msra.mxu0 0.0
  %1050 = vmatprep.subr.mxu0 0.0
  %1051 = vmatpush1.msra.mxu0 0.0
  %1052 = vmatprep.subr.mxu0 0.0
  %1053 = vmatpush1.msra.mxu0 0.0
  %1054 = vmatprep.subr.mxu0 0.0
  %1055 = vmatpush1.msra.mxu0 0.0
  %1056 = vmatprep.subr.mxu0 0.0
  %1057 = vmatpush1.msra.mxu0 0.0
  %1058 = vmatprep.subr.mxu0 0.0
  %1059 = vmatpush1.msra.mxu0 0.0
  %1060 = vmatprep.subr.mxu0 0.0
  %1061 = vmatpush1.msra.mxu0 0.0
  %1062 = vmatprep.subr.mxu0 0.0
  %1063 = vmatpush1.msra.mxu0 0.0
  %1064 = vmatprep.subr.mxu0 0.0
  %1065 = vmatpush1.msra.mxu0 0.0
  %1066 = vmatprep.subr.mxu0 0.0
  %1067 = vmatpush1.msra.mxu0 0.0
  %1068 = vmatprep.subr.mxu0 0.0
  %1069 = vmatpush1.msra.mxu0 0.0
  %1070 = vmatprep.subr.mxu0 0.0
  %1071 = vmatpush1.msra.mxu0 0.0
  %1072 = vmatprep.subr.mxu0 0.0
  %1073 = vmatpush1.msra.mxu0 0.0
  %1074 = vmatprep.mubr.f32.mxu0 0.0
  %1075 = vmatmul.mubr.f32.gmra.mrb[0].mxu0 %v1001
  %v1076 = vpop.f32.mrb[0].mxu0
  %v1077 = vadd.f32 %v992, %v1076
  %v1078 = vpop.f32.mrb[0].mxu0
  %v1079 = vadd.f32 %v996, %v1078
  %1080 = vdwg.mxu0
  %v1081 = vmul.f32 %v1077, 0.5
  %v1082 = vmul.f32 %v1079, 0.5
  %v1083 = vmul.f32 %v1077, 0.044715
  %v1084 = vmul.f32 %v1079, 0.044715
  %v1085 = vmul.f32 %v1083, %v1077
  %v1086 = vmul.f32 %v1084, %v1079
  %v1087 = vmul.f32 %v1085, %v1077
  %v1088 = vmul.f32 %v1086, %v1079
  %v1089 = vadd.f32 %v1077, %v1087
  %v1090 = vadd.f32 %v1079, %v1088
  %v1091 = vmul.f32 %v1089, 0.7978846
  %v1092 = vmul.f32 %v1090, 0.7978846
  %v1093 = vtanh.pop %v1091
  %v1094 = vtanh.pop %v1092
  %v1095 = vadd.f32 %v1093, 1.0
  %v1096 = vadd.f32 %v1094, 1.0
  %v1097 = vmul.f32 %v1081, %v1095
  %v1098 = vmul.f32 %v1082, %v1096
  %v1099 = vld [vmem:[%s13] sm:$0xff]
  %v1100 = vld [vmem:[%s13 + $0x8] sm:$0xff]
  %v1101 = vld [vmem:[%s13 + $0x10] sm:$0xff]
  %v1102 = vld [vmem:[%s13 + $0x18] sm:$0xff]
  %v1103 = vld [vmem:[%s13 + $0x20] sm:$0xff]
  %v1104 = vld [vmem:[%s13 + $0x28] sm:$0xff]
  %v1105 = vld [vmem:[%s13 + $0x30] sm:$0xff]
  %v1106 = vld [vmem:[%s13 + $0x38] sm:$0xff]
  %v1107 = vld [vmem:[%s13 + $0x40] sm:$0xff]
  %v1108 = vld [vmem:[%s13 + $0x48] sm:$0xff]
  %v1109 = vld [vmem:[%s13 + $0x50] sm:$0xff]
  %v1110 = vld [vmem:[%s13 + $0x58] sm:$0xff]
  %v1111 = vld [vmem:[%s13 + $0x60] sm:$0xff]
  %v1112 = vld [vmem:[%s13 + $0x68] sm:$0xff]
  %v1113 = vld [vmem:[%s13 + $0x70] sm:$0xff]
  %v1114 = vld [vmem:[%s13 + $0x78] sm:$0xff]
  %v1115 = vld [vmem:[%s13 + $0x80] sm:$0xff]
  %v1116 = vld [vmem:[%s13 + $0x88] sm:$0xff]
  %v1117 = vld [vmem:[%s13 + $0x90] sm:$0xff]
  %v1118 = vld [vmem:[%s13 + $0x98] sm:$0xff]
  %v1119 = vld [vmem:[%s13 + $0xa0] sm:$0xff]
  %v1120 = vld [vmem:[%s13 + $0xa8] sm:$0xff]
  %v1121 = vld [vmem:[%s13 + $0xb0] sm:$0xff]
  %v1122 = vld [vmem:[%s13 + $0xb8] sm:$0xff]
  %v1123 = vld [vmem:[%s13 + $0xc0] sm:$0xff]
  %v1124 = vld [vmem:[%s13 + $0xc8] sm:$0xff]
  %v1125 = vld [vmem:[%s13 + $0xd0] sm:$0xff]
  %v1126 = vld [vmem:[%s13 + $0xd8] sm:$0xff]
  %v1127 = vld [vmem:[%s13 + $0xe0] sm:$0xff]
  %v1128 = vld [vmem:[%s13 + $0xe8] sm:$0xff]
  %v1129 = vld [vmem:[%s13 + $0xf0] sm:$0xff]
  %v1130 = vld [vmem:[%s13 + $0xf8] sm:$0xff]
  %v1131 = vld [vmem:[%s13 + $0x100] sm:$0xff]
  %v1132 = vld [vmem:[%s13 + $0x108] sm:$0xff]
  %v1133 = vld [vmem:[%s13 + $0x110] sm:$0xff]
  %v1134 = vld [vmem:[%s13 + $0x118] sm:$0xff]
  %v1135 = vld [vmem:[%s13 + $0x120] sm:$0xff]
  %v1136 = vld [vmem:[%s13 + $0x128] sm:$0xff]
  %v1137 = vld [vmem:[%s13 + $0x130] sm:$0xff]
  %v1138 = vld [vmem:[%s13 + $0x138] sm:$0xff]
  %s1139 = scalar_lea.vmem %s12, 1
  %v1140 = vld [vmem:[%s1139] ss:$4 sm:$0x3]
  %v1142 = vlaneseq
  %v1143 = vshrl.u32 %v1142, 7
  %v1144 = vsub.s32 0, %v1143
  %v1145 = vrot.slane %v1140, %v1144
  %v1146 = vlaneseq
  %v1147 = vshrl.u32 %v1146, 7
  %v1148 = vsub.s32 1, %v1147
  %v1149 = vrot.slane %v1140, %v1148
  %vm1152 = vcmask 261120
  %v1154 = vsel %vm1152, %v1098, 0
  %1156 = vmatprep.subr.mxu0 %v1100
  %1157 = vmatpush1.msra.mxu0 %v1099
  %1158 = vmatprep.subr.mxu0 %v1102
  %1159 = vmatpush1.msra.mxu0 %v1101
  %1160 = vmatprep.subr.mxu0 %v1104
  %1161 = vmatpush1.msra.mxu0 %v1103
  %1162 = vmatprep.subr.mxu0 %v1106
  %1163 = vmatpush1.msra.mxu0 %v1105
  %1164 = vmatprep.subr.mxu0 %v1108
  %1165 = vmatpush1.msra.mxu0 %v1107
  %1166 = vmatprep.subr.mxu0 %v1110
  %1167 = vmatpush1.msra.mxu0 %v1109
  %1168 = vmatprep.subr.mxu0 %v1112
  %1169 = vmatpush1.msra.mxu0 %v1111
  %1170 = vmatprep.subr.mxu0 %v1114
  %1171 = vmatpush1.msra.mxu0 %v1113
  %1172 = vmatprep.subr.mxu0 %v1116
  %1173 = vmatpush1.msra.mxu0 %v1115
  %1174 = vmatprep.subr.mxu0 %v1118
  %1175 = vmatpush1.msra.mxu0 %v1117
  %1176 = vmatprep.subr.mxu0 %v1120
  %1177 = vmatpush1.msra.mxu0 %v1119
  %1178 = vmatprep.subr.mxu0 %v1122
  %1179 = vmatpush1.msra.mxu0 %v1121
  %1180 = vmatprep.subr.mxu0 %v1124
  %1181 = vmatpush1.msra.mxu0 %v1123
  %1182 = vmatprep.subr.mxu0 %v1126
  %1183 = vmatpush1.msra.mxu0 %v1125
  %1184 = vmatprep.subr.mxu0 %v1128
  %1185 = vmatpush1.msra.mxu0 %v1127
  %1186 = vmatprep.subr.mxu0 %v1130
  %1187 = vmatpush1.msra.mxu0 %v1129
  %1188 = vmatprep.subr.mxu0 %v1132
  %1189 = vmatpush1.msra.mxu0 %v1131
  %1190 = vmatprep.subr.mxu0 %v1134
  %1191 = vmatpush1.msra.mxu0 %v1133
  %1192 = vmatprep.subr.mxu0 %v1136
  %1193 = vmatpush1.msra.mxu0 %v1135
  %1194 = vmatprep.subr.mxu0 %v1138
  %1195 = vmatpush1.msra.mxu0 %v1137
  %1196 = vmatprep.subr.mxu0 0.0
  %1197 = vmatpush1.msra.mxu0 0.0
  %1198 = vmatprep.subr.mxu0 0.0
  %1199 = vmatpush1.msra.mxu0 0.0
  %1200 = vmatprep.subr.mxu0 0.0
  %1201 = vmatpush1.msra.mxu0 0.0
  %1202 = vmatprep.subr.mxu0 0.0
  %1203 = vmatpush1.msra.mxu0 0.0
  %1204 = vmatprep.subr.mxu0 0.0
  %1205 = vmatpush1.msra.mxu0 0.0
  %1206 = vmatprep.subr.mxu0 0.0
  %1207 = vmatpush1.msra.mxu0 0.0
  %1208 = vmatprep.subr.mxu0 0.0
  %1209 = vmatpush1.msra.mxu0 0.0
  %1210 = vmatprep.subr.mxu0 0.0
  %1211 = vmatpush1.msra.mxu0 0.0
  %1212 = vmatprep.subr.mxu0 0.0
  %1213 = vmatpush1.msra.mxu0 0.0
  %1214 = vmatprep.subr.mxu0 0.0
  %1215 = vmatpush1.msra.mxu0 0.0
  %1216 = vmatprep.subr.mxu0 0.0
  %1217 = vmatpush1.msra.mxu0 0.0
  %1218 = vmatprep.subr.mxu0 0.0
  %1219 = vmatpush1.msra.mxu0 0.0
  %1220 = vmatprep.mubr.f32.mxu0 %v1154
  %1221 = vmatmul.mubr.f32.gmra.mrb[0].mxu0 %v1097
  %v1222 = vpop.f32.mrb[0].mxu0
  %v1223 = vadd.f32 %v1145, %v1222
  %v1224 = vpop.f32.mrb[0].mxu0
  %v1225 = vadd.f32 %v1149, %v1224
  %1226 = vdwg.mxu0
  %v1227 = vmul.f32 %v1223, 0.5
  %v1228 = vmul.f32 %v1225, 0.5
  %v1229 = vmul.f32 %v1223, 0.044715
  %v1230 = vmul.f32 %v1225, 0.044715
  %v1231 = vmul.f32 %v1229, %v1223
  %v1232 = vmul.f32 %v1230, %v1225
  %v1233 = vmul.f32 %v1231, %v1223
  %v1234 = vmul.f32 %v1232, %v1225
  %v1235 = vadd.f32 %v1223, %v1233
  %v1236 = vadd.f32 %v1225, %v1234
  %v1237 = vmul.f32 %v1235, 0.7978846
  %v1238 = vmul.f32 %v1236, 0.7978846
  %v1239 = vtanh.pop %v1237
  %v1240 = vtanh.pop %v1238
  %v1241 = vadd.f32 %v1239, 1.0
  %v1242 = vadd.f32 %v1240, 1.0
  %v1243 = vmul.f32 %v1227, %v1241
  %v1244 = vmul.f32 %v1228, %v1242
  %s1245 = scalar_lea.vmem %s13, 320
  %v1246 = vld [vmem:[%s1245] sm:$0xff]
  %v1247 = vld [vmem:[%s1245 + $0x8] sm:$0xff]
  %v1248 = vld [vmem:[%s1245 + $0x10] sm:$0xff]
  %v1249 = vld [vmem:[%s1245 + $0x18] sm:$0xff]
  %v1250 = vld [vmem:[%s1245 + $0x20] sm:$0xff]
  %v1251 = vld [vmem:[%s1245 + $0x28] sm:$0xff]
  %v1252 = vld [vmem:[%s1245 + $0x30] sm:$0xff]
  %v1253 = vld [vmem:[%s1245 + $0x38] sm:$0xff]
  %v1254 = vld [vmem:[%s1245 + $0x40] sm:$0xff]
  %v1255 = vld [vmem:[%s1245 + $0x48] sm:$0xff]
  %v1256 = vld [vmem:[%s1245 + $0x50] sm:$0xff]
  %v1257 = vld [vmem:[%s1245 + $0x58] sm:$0xff]
  %v1258 = vld [vmem:[%s1245 + $0x60] sm:$0xff]
  %v1259 = vld [vmem:[%s1245 + $0x68] sm:$0xff]
  %v1260 = vld [vmem:[%s1245 + $0x70] sm:$0xff]
  %v1261 = vld [vmem:[%s1245 + $0x78] sm:$0xff]
  %v1262 = vld [vmem:[%s1245 + $0x80] sm:$0xff]
  %v1263 = vld [vmem:[%s1245 + $0x88] sm:$0xff]
  %v1264 = vld [vmem:[%s1245 + $0x90] sm:$0xff]
  %v1265 = vld [vmem:[%s1245 + $0x98] sm:$0xff]
  %v1266 = vld [vmem:[%s1245 + $0xa0] sm:$0xff]
  %v1267 = vld [vmem:[%s1245 + $0xa8] sm:$0xff]
  %v1268 = vld [vmem:[%s1245 + $0xb0] sm:$0xff]
  %v1269 = vld [vmem:[%s1245 + $0xb8] sm:$0xff]
  %v1270 = vld [vmem:[%s1245 + $0xc0] sm:$0xff]
  %v1271 = vld [vmem:[%s1245 + $0xc8] sm:$0xff]
  %v1272 = vld [vmem:[%s1245 + $0xd0] sm:$0xff]
  %v1273 = vld [vmem:[%s1245 + $0xd8] sm:$0xff]
  %v1274 = vld [vmem:[%s1245 + $0xe0] sm:$0xff]
  %v1275 = vld [vmem:[%s1245 + $0xe8] sm:$0xff]
  %v1276 = vld [vmem:[%s1245 + $0xf0] sm:$0xff]
  %v1277 = vld [vmem:[%s1245 + $0xf8] sm:$0xff]
  %v1278 = vld [vmem:[%s1245 + $0x100] sm:$0xff]
  %v1279 = vld [vmem:[%s1245 + $0x108] sm:$0xff]
  %v1280 = vld [vmem:[%s1245 + $0x110] sm:$0xff]
  %v1281 = vld [vmem:[%s1245 + $0x118] sm:$0xff]
  %v1282 = vld [vmem:[%s1245 + $0x120] sm:$0xff]
  %v1283 = vld [vmem:[%s1245 + $0x128] sm:$0xff]
  %v1284 = vld [vmem:[%s1245 + $0x130] sm:$0xff]
  %v1285 = vld [vmem:[%s1245 + $0x138] sm:$0xff]
  %s1286 = scalar_lea.vmem %s12, 2
  %v1287 = vld [vmem:[%s1286] ss:$4 sm:$0x3]
  %v1289 = vlaneseq
  %v1290 = vshrl.u32 %v1289, 7
  %v1291 = vsub.s32 0, %v1290
  %v1292 = vrot.slane %v1287, %v1291
  %v1293 = vlaneseq
  %v1294 = vshrl.u32 %v1293, 7
  %v1295 = vsub.s32 1, %v1294
  %v1296 = vrot.slane %v1287, %v1295
  %v1300 = vsel %vm1152, %v1244, 0
  %1302 = vmatprep.subr.mxu0 %v1247
  %1303 = vmatpush1.msra.mxu0 %v1246
  %1304 = vmatprep.subr.mxu0 %v1249
  %1305 = vmatpush1.msra.mxu0 %v1248
  %1306 = vmatprep.subr.mxu0 %v1251
  %1307 = vmatpush1.msra.mxu0 %v1250
  %1308 = vmatprep.subr.mxu0 %v1253
  %1309 = vmatpush1.msra.mxu0 %v1252
  %1310 = vmatprep.subr.mxu0 %v1255
  %1311 = vmatpush1.msra.mxu0 %v1254
  %1312 = vmatprep.subr.mxu0 %v1257
  %1313 = vmatpush1.msra.mxu0 %v1256
  %1314 = vmatprep.subr.mxu0 %v1259
  %1315 = vmatpush1.msra.mxu0 %v1258
  %1316 = vmatprep.subr.mxu0 %v1261
  %1317 = vmatpush1.msra.mxu0 %v1260
  %1318 = vmatprep.subr.mxu0 %v1263
  %1319 = vmatpush1.msra.mxu0 %v1262
  %1320 = vmatprep.subr.mxu0 %v1265
  %1321 = vmatpush1.msra.mxu0 %v1264
  %1322 = vmatprep.subr.mxu0 %v1267
  %1323 = vmatpush1.msra.mxu0 %v1266
  %1324 = vmatprep.subr.mxu0 %v1269
  %1325 = vmatpush1.msra.mxu0 %v1268
  %1326 = vmatprep.subr.mxu0 %v1271
  %1327 = vmatpush1.msra.mxu0 %v1270
  %1328 = vmatprep.subr.mxu0 %v1273
  %1329 = vmatpush1.msra.mxu0 %v1272
  %1330 = vmatprep.subr.mxu0 %v1275
  %1331 = vmatpush1.msra.mxu0 %v1274
  %1332 = vmatprep.subr.mxu0 %v1277
  %1333 = vmatpush1.msra.mxu0 %v1276
  %1334 = vmatprep.subr.mxu0 %v1279
  %1335 = vmatpush1.msra.mxu0 %v1278
  %1336 = vmatprep.subr.mxu0 %v1281
  %1337 = vmatpush1.msra.mxu0 %v1280
  %1338 = vmatprep.subr.mxu0 %v1283
  %1339 = vmatpush1.msra.mxu0 %v1282
  %1340 = vmatprep.subr.mxu0 %v1285
  %1341 = vmatpush1.msra.mxu0 %v1284
  %1342 = vmatprep.subr.mxu0 0.0
  %1343 = vmatpush1.msra.mxu0 0.0
  %1344 = vmatprep.subr.mxu0 0.0
  %1345 = vmatpush1.msra.mxu0 0.0
  %1346 = vmatprep.subr.mxu0 0.0
  %1347 = vmatpush1.msra.mxu0 0.0
  %1348 = vmatprep.subr.mxu0 0.0
  %1349 = vmatpush1.msra.mxu0 0.0
  %1350 = vmatprep.subr.mxu0 0.0
  %1351 = vmatpush1.msra.mxu0 0.0
  %1352 = vmatprep.subr.mxu0 0.0
  %1353 = vmatpush1.msra.mxu0 0.0
  %1354 = vmatprep.subr.mxu0 0.0
  %1355 = vmatpush1.msra.mxu0 0.0
  %1356 = vmatprep.subr.mxu0 0.0
  %1357 = vmatpush1.msra.mxu0 0.0
  %1358 = vmatprep.subr.mxu0 0.0
  %1359 = vmatpush1.msra.mxu0 0.0
  %1360 = vmatprep.subr.mxu0 0.0
  %1361 = vmatpush1.msra.mxu0 0.0
  %1362 = vmatprep.subr.mxu0 0.0
  %1363 = vmatpush1.msra.mxu0 0.0
  %1364 = vmatprep.subr.mxu0 0.0
  %1365 = vmatpush1.msra.mxu0 0.0
  %1366 = vmatprep.mubr.f32.mxu0 %v1300
  %1367 = vmatmul.mubr.f32.gmra.mrb[0].mxu0 %v1243
  %v1368 = vpop.f32.mrb[0].mxu0
  %v1369 = vadd.f32 %v1292, %v1368
  %v1370 = vpop.f32.mrb[0].mxu0
  %v1371 = vadd.f32 %v1296, %v1370
  %1372 = vdwg.mxu0
  %v1373 = vmul.f32 %v1369, 0.5
  %v1374 = vmul.f32 %v1371, 0.5
  %v1375 = vmul.f32 %v1369, 0.044715
  %v1376 = vmul.f32 %v1371, 0.044715
  %v1377 = vmul.f32 %v1375, %v1369
  %v1378 = vmul.f32 %v1376, %v1371
  %v1379 = vmul.f32 %v1377, %v1369
  %v1380 = vmul.f32 %v1378, %v1371
  %v1381 = vadd.f32 %v1369, %v1379
  %v1382 = vadd.f32 %v1371, %v1380
  %v1383 = vmul.f32 %v1381, 0.7978846
  %v1384 = vmul.f32 %v1382, 0.7978846
  %v1385 = vtanh.pop %v1383
  %v1386 = vtanh.pop %v1384
  %v1387 = vadd.f32 %v1385, 1.0
  %v1388 = vadd.f32 %v1386, 1.0
  %v1389 = vmul.f32 %v1373, %v1387
  %v1390 = vmul.f32 %v1374, %v1388
  %s1391 = scalar_lea.vmem %s13, 640
  %v1392 = vld [vmem:[%s1391] sm:$0xff]
  %v1393 = vld [vmem:[%s1391 + $0x8] sm:$0xff]
  %v1394 = vld [vmem:[%s1391 + $0x10] sm:$0xff]
  %v1395 = vld [vmem:[%s1391 + $0x18] sm:$0xff]
  %v1396 = vld [vmem:[%s1391 + $0x20] sm:$0xff]
  %v1397 = vld [vmem:[%s1391 + $0x28] sm:$0xff]
  %v1398 = vld [vmem:[%s1391 + $0x30] sm:$0xff]
  %v1399 = vld [vmem:[%s1391 + $0x38] sm:$0xff]
  %v1400 = vld [vmem:[%s1391 + $0x40] sm:$0xff]
  %v1401 = vld [vmem:[%s1391 + $0x48] sm:$0xff]
  %v1402 = vld [vmem:[%s1391 + $0x50] sm:$0xff]
  %v1403 = vld [vmem:[%s1391 + $0x58] sm:$0xff]
  %v1404 = vld [vmem:[%s1391 + $0x60] sm:$0xff]
  %v1405 = vld [vmem:[%s1391 + $0x68] sm:$0xff]
  %v1406 = vld [vmem:[%s1391 + $0x70] sm:$0xff]
  %v1407 = vld [vmem:[%s1391 + $0x78] sm:$0xff]
  %v1408 = vld [vmem:[%s1391 + $0x80] sm:$0xff]
  %v1409 = vld [vmem:[%s1391 + $0x88] sm:$0xff]
  %v1410 = vld [vmem:[%s1391 + $0x90] sm:$0xff]
  %v1411 = vld [vmem:[%s1391 + $0x98] sm:$0xff]
  %v1412 = vld [vmem:[%s1391 + $0xa0] sm:$0xff]
  %v1413 = vld [vmem:[%s1391 + $0xa8] sm:$0xff]
  %v1414 = vld [vmem:[%s1391 + $0xb0] sm:$0xff]
  %v1415 = vld [vmem:[%s1391 + $0xb8] sm:$0xff]
  %v1416 = vld [vmem:[%s1391 + $0xc0] sm:$0xff]
  %v1417 = vld [vmem:[%s1391 + $0xc8] sm:$0xff]
  %v1418 = vld [vmem:[%s1391 + $0xd0] sm:$0xff]
  %v1419 = vld [vmem:[%s1391 + $0xd8] sm:$0xff]
  %v1420 = vld [vmem:[%s1391 + $0xe0] sm:$0xff]
  %v1421 = vld [vmem:[%s1391 + $0xe8] sm:$0xff]
  %v1422 = vld [vmem:[%s1391 + $0xf0] sm:$0xff]
  %v1423 = vld [vmem:[%s1391 + $0xf8] sm:$0xff]
  %v1424 = vld [vmem:[%s1391 + $0x100] sm:$0xff]
  %v1425 = vld [vmem:[%s1391 + $0x108] sm:$0xff]
  %v1426 = vld [vmem:[%s1391 + $0x110] sm:$0xff]
  %v1427 = vld [vmem:[%s1391 + $0x118] sm:$0xff]
  %v1428 = vld [vmem:[%s1391 + $0x120] sm:$0xff]
  %v1429 = vld [vmem:[%s1391 + $0x128] sm:$0xff]
  %v1430 = vld [vmem:[%s1391 + $0x130] sm:$0xff]
  %v1431 = vld [vmem:[%s1391 + $0x138] sm:$0xff]
  %s1432 = scalar_lea.vmem %s12, 3
  %v1433 = vld [vmem:[%s1432] ss:$4 sm:$0x3]
  %v1435 = vlaneseq
  %v1436 = vshrl.u32 %v1435, 7
  %v1437 = vsub.s32 0, %v1436
  %v1438 = vrot.slane %v1433, %v1437
  %v1439 = vlaneseq
  %v1440 = vshrl.u32 %v1439, 7
  %v1441 = vsub.s32 1, %v1440
  %v1442 = vrot.slane %v1433, %v1441
  %v1446 = vsel %vm1152, %v1390, 0
  %1448 = vmatprep.subr.mxu0 %v1393
  %1449 = vmatpush1.msra.mxu0 %v1392
  %1450 = vmatprep.subr.mxu0 %v1395
  %1451 = vmatpush1.msra.mxu0 %v1394
  %1452 = vmatprep.subr.mxu0 %v1397
  %1453 = vmatpush1.msra.mxu0 %v1396
  %1454 = vmatprep.subr.mxu0 %v1399
  %1455 = vmatpush1.msra.mxu0 %v1398
  %1456 = vmatprep.subr.mxu0 %v1401
  %1457 = vmatpush1.msra.mxu0 %v1400
  %1458 = vmatprep.subr.mxu0 %v1403
  %1459 = vmatpush1.msra.mxu0 %v1402
  %1460 = vmatprep.subr.mxu0 %v1405
  %1461 = vmatpush1.msra.mxu0 %v1404
  %1462 = vmatprep.subr.mxu0 %v1407
  %1463 = vmatpush1.msra.mxu0 %v1406
  %1464 = vmatprep.subr.mxu0 %v1409
  %1465 = vmatpush1.msra.mxu0 %v1408
  %1466 = vmatprep.subr.mxu0 %v1411
  %1467 = vmatpush1.msra.mxu0 %v1410
  %1468 = vmatprep.subr.mxu0 %v1413
  %1469 = vmatpush1.msra.mxu0 %v1412
  %1470 = vmatprep.subr.mxu0 %v1415
  %1471 = vmatpush1.msra.mxu0 %v1414
  %1472 = vmatprep.subr.mxu0 %v1417
  %1473 = vmatpush1.msra.mxu0 %v1416
  %1474 = vmatprep.subr.mxu0 %v1419
  %1475 = vmatpush1.msra.mxu0 %v1418
  %1476 = vmatprep.subr.mxu0 %v1421
  %1477 = vmatpush1.msra.mxu0 %v1420
  %1478 = vmatprep.subr.mxu0 %v1423
  %1479 = vmatpush1.msra.mxu0 %v1422
  %1480 = vmatprep.subr.mxu0 %v1425
  %1481 = vmatpush1.msra.mxu0 %v1424
  %1482 = vmatprep.subr.mxu0 %v1427
  %1483 = vmatpush1.msra.mxu0 %v1426
  %1484 = vmatprep.subr.mxu0 %v1429
  %1485 = vmatpush1.msra.mxu0 %v1428
  %1486 = vmatprep.subr.mxu0 %v1431
  %1487 = vmatpush1.msra.mxu0 %v1430
  %1488 = vmatprep.subr.mxu0 0.0
  %1489 = vmatpush1.msra.mxu0 0.0
  %1490 = vmatprep.subr.mxu0 0.0
  %1491 = vmatpush1.msra.mxu0 0.0
  %1492 = vmatprep.subr.mxu0 0.0
  %1493 = vmatpush1.msra.mxu0 0.0
  %1494 = vmatprep.subr.mxu0 0.0
  %1495 = vmatpush1.msra.mxu0 0.0
  %1496 = vmatprep.subr.mxu0 0.0
  %1497 = vmatpush1.msra.mxu0 0.0
  %1498 = vmatprep.subr.mxu0 0.0
  %1499 = vmatpush1.msra.mxu0 0.0
  %1500 = vmatprep.subr.mxu0 0.0
  %1501 = vmatpush1.msra.mxu0 0.0
  %1502 = vmatprep.subr.mxu0 0.0
  %1503 = vmatpush1.msra.mxu0 0.0
  %1504 = vmatprep.subr.mxu0 0.0
  %1505 = vmatpush1.msra.mxu0 0.0
  %1506 = vmatprep.subr.mxu0 0.0
  %1507 = vmatpush1.msra.mxu0 0.0
  %1508 = vmatprep.subr.mxu0 0.0
  %1509 = vmatpush1.msra.mxu0 0.0
  %1510 = vmatprep.subr.mxu0 0.0
  %1511 = vmatpush1.msra.mxu0 0.0
  %1512 = vmatprep.mubr.f32.mxu0 %v1446
  %1513 = vmatmul.mubr.f32.gmra.mrb[0].mxu0 %v1389
  %v1514 = vpop.f32.mrb[0].mxu0
  %v1515 = vadd.f32 %v1438, %v1514
  %v1516 = vpop.f32.mrb[0].mxu0
  %v1517 = vadd.f32 %v1442, %v1516
  %1518 = vdwg.mxu0
  %v1519 = vmul.f32 %v1515, 0.5
  %v1520 = vmul.f32 %v1517, 0.5
  %v1521 = vmul.f32 %v1515, 0.044715
  %v1522 = vmul.f32 %v1517, 0.044715
  %v1523 = vmul.f32 %v1521, %v1515
  %v1524 = vmul.f32 %v1522, %v1517
  %v1525 = vmul.f32 %v1523, %v1515
  %v1526 = vmul.f32 %v1524, %v1517
  %v1527 = vadd.f32 %v1515, %v1525
  %v1528 = vadd.f32 %v1517, %v1526
  %v1529 = vmul.f32 %v1527, 0.7978846
  %v1530 = vmul.f32 %v1528, 0.7978846
  %v1531 = vtanh.pop %v1529
  %v1532 = vtanh.pop %v1530
  %v1533 = vadd.f32 %v1531, 1.0
  %v1534 = vadd.f32 %v1532, 1.0
  %v1535 = vmul.f32 %v1519, %v1533
  %v1536 = vmul.f32 %v1520, %v1534
  %v1537 = vld [vmem:[%s14] sm:$0xff]
  %v1538 = vld [vmem:[%s14 + $0x8] sm:$0xff]
  %v1539 = vld [vmem:[%s14 + $0x10] sm:$0xff]
  %v1540 = vld [vmem:[%s14 + $0x18] sm:$0xff]
  %v1541 = vld [vmem:[%s14 + $0x20] sm:$0xff]
  %v1542 = vld [vmem:[%s14 + $0x28] sm:$0xff]
  %v1543 = vld [vmem:[%s14 + $0x30] sm:$0xff]
  %v1544 = vld [vmem:[%s14 + $0x38] sm:$0xff]
  %v1545 = vld [vmem:[%s14 + $0x40] sm:$0xff]
  %v1546 = vld [vmem:[%s14 + $0x48] sm:$0xff]
  %v1547 = vld [vmem:[%s14 + $0x50] sm:$0xff]
  %v1548 = vld [vmem:[%s14 + $0x58] sm:$0xff]
  %v1549 = vld [vmem:[%s14 + $0x60] sm:$0xff]
  %v1550 = vld [vmem:[%s14 + $0x68] sm:$0xff]
  %v1551 = vld [vmem:[%s14 + $0x70] sm:$0xff]
  %v1552 = vld [vmem:[%s14 + $0x78] sm:$0xff]
  %v1553 = vld [vmem:[%s14 + $0x80] sm:$0xff]
  %v1554 = vld [vmem:[%s14 + $0x88] sm:$0xff]
  %v1555 = vld [vmem:[%s14 + $0x90] sm:$0xff]
  %v1556 = vld [vmem:[%s14 + $0x98] sm:$0xff]
  %v1557 = vld [vmem:[%s15] sm:$0x1]
  %v1558 = vlaneseq
  %v1559 = vshrl.u32 %v1558, 7
  %v1560 = vsub.s32 0, %v1559
  %v1561 = vrot.slane %v1557, %v1560
  %v1563 = vsel %vm1152, %v1536, 0
  %1565 = vmatprep.subr.mxu0 0.0
  %1566 = vmatpush1.msra.mxu0 %v1537
  %1567 = vmatprep.subr.mxu0 0.0
  %1568 = vmatpush1.msra.mxu0 %v1538
  %1569 = vmatprep.subr.mxu0 0.0
  %1570 = vmatpush1.msra.mxu0 %v1539
  %1571 = vmatprep.subr.mxu0 0.0
  %1572 = vmatpush1.msra.mxu0 %v1540
  %1573 = vmatprep.subr.mxu0 0.0
  %1574 = vmatpush1.msra.mxu0 %v1541
  %1575 = vmatprep.subr.mxu0 0.0
  %1576 = vmatpush1.msra.mxu0 %v1542
  %1577 = vmatprep.subr.mxu0 0.0
  %1578 = vmatpush1.msra.mxu0 %v1543
  %1579 = vmatprep.subr.mxu0 0.0
  %1580 = vmatpush1.msra.mxu0 %v1544
  %1581 = vmatprep.subr.mxu0 0.0
  %1582 = vmatpush1.msra.mxu0 %v1545
  %1583 = vmatprep.subr.mxu0 0.0
  %1584 = vmatpush1.msra.mxu0 %v1546
  %1585 = vmatprep.subr.mxu0 0.0
  %1586 = vmatpush1.msra.mxu0 %v1547
  %1587 = vmatprep.subr.mxu0 0.0
  %1588 = vmatpush1.msra.mxu0 %v1548
  %1589 = vmatprep.subr.mxu0 0.0
  %1590 = vmatpush1.msra.mxu0 %v1549
  %1591 = vmatprep.subr.mxu0 0.0
  %1592 = vmatpush1.msra.mxu0 %v1550
  %1593 = vmatprep.subr.mxu0 0.0
  %1594 = vmatpush1.msra.mxu0 %v1551
  %1595 = vmatprep.subr.mxu0 0.0
  %1596 = vmatpush1.msra.mxu0 %v1552
  %1597 = vmatprep.subr.mxu0 0.0
  %1598 = vmatpush1.msra.mxu0 %v1553
  %1599 = vmatprep.subr.mxu0 0.0
  %1600 = vmatpush1.msra.mxu0 %v1554
  %1601 = vmatprep.subr.mxu0 0.0
  %1602 = vmatpush1.msra.mxu0 %v1555
  %1603 = vmatprep.subr.mxu0 0.0
  %1604 = vmatpush1.msra.mxu0 %v1556
  %1605 = vmatprep.subr.mxu0 0.0
  %1606 = vmatpush1.msra.mxu0 0.0
  %1607 = vmatprep.subr.mxu0 0.0
  %1608 = vmatpush1.msra.mxu0 0.0
  %1609 = vmatprep.subr.mxu0 0.0
  %1610 = vmatpush1.msra.mxu0 0.0
  %1611 = vmatprep.subr.mxu0 0.0
  %1612 = vmatpush1.msra.mxu0 0.0
  %1613 = vmatprep.subr.mxu0 0.0
  %1614 = vmatpush1.msra.mxu0 0.0
  %1615 = vmatprep.subr.mxu0 0.0
  %1616 = vmatpush1.msra.mxu0 0.0
  %1617 = vmatprep.subr.mxu0 0.0
  %1618 = vmatpush1.msra.mxu0 0.0
  %1619 = vmatprep.subr.mxu0 0.0
  %1620 = vmatpush1.msra.mxu0 0.0
  %1621 = vmatprep.subr.mxu0 0.0
  %1622 = vmatpush1.msra.mxu0 0.0
  %1623 = vmatprep.subr.mxu0 0.0
  %1624 = vmatpush1.msra.mxu0 0.0
  %1625 = vmatprep.subr.mxu0 0.0
  %1626 = vmatpush1.msra.mxu0 0.0
  %1627 = vmatprep.subr.mxu0 0.0
  %1628 = vmatpush1.msra.mxu0 0.0
  %1629 = vmatprep.mubr.f32.mxu0 %v1563
  %1630 = vmatmul.mubr.f32.gmra.mrb[0].mxu0 %v1535
  %v1631 = vpop.f32.mrb[0].mxu0
  %v1632 = vadd.f32 %v1561, %v1631
  %v1633 = vpop.f32.mrb[0].mxu0
  %1634 = vdwg.mxu0
  %s1635 = scalar_lea.vmem %s14, 160
  %v1636 = vld [vmem:[%s1635] sm:$0xff]
  %v1637 = vld [vmem:[%s1635 + $0x8] sm:$0xff]
  %v1638 = vld [vmem:[%s1635 + $0x10] sm:$0xff]
  %v1639 = vld [vmem:[%s1635 + $0x18] sm:$0xff]
  %v1640 = vld [vmem:[%s1635 + $0x20] sm:$0xff]
  %v1641 = vld [vmem:[%s1635 + $0x28] sm:$0xff]
  %v1642 = vld [vmem:[%s1635 + $0x30] sm:$0xff]
  %v1643 = vld [vmem:[%s1635 + $0x38] sm:$0xff]
  %v1644 = vld [vmem:[%s1635 + $0x40] sm:$0xff]
  %v1645 = vld [vmem:[%s1635 + $0x48] sm:$0xff]
  %v1646 = vld [vmem:[%s1635 + $0x50] sm:$0xff]
  %v1647 = vld [vmem:[%s1635 + $0x58] sm:$0xff]
  %v1648 = vld [vmem:[%s1635 + $0x60] sm:$0xff]
  %v1649 = vld [vmem:[%s1635 + $0x68] sm:$0xff]
  %v1650 = vld [vmem:[%s1635 + $0x70] sm:$0xff]
  %v1651 = vld [vmem:[%s1635 + $0x78] sm:$0xff]
  %v1652 = vld [vmem:[%s1635 + $0x80] sm:$0xff]
  %v1653 = vld [vmem:[%s1635 + $0x88] sm:$0xff]
  %v1654 = vld [vmem:[%s1635 + $0x90] sm:$0xff]
  %v1655 = vld [vmem:[%s1635 + $0x98] sm:$0xff]
  %v1656 = vld [vmem:[%s15 + $0x1] sm:$0x1]
  %v1657 = vlaneseq
  %v1658 = vshrl.u32 %v1657, 7
  %v1659 = vsub.s32 0, %v1658
  %v1660 = vrot.slane %v1656, %v1659
  %1661 = vmatprep.subr.mxu0 0.0
  %1662 = vmatpush1.msra.mxu0 %v1636
  %1663 = vmatprep.subr.mxu0 0.0
  %1664 = vmatpush1.msra.mxu0 %v1637
  %1665 = vmatprep.subr.mxu0 0.0
  %1666 = vmatpush1.msra.mxu0 %v1638
  %1667 = vmatprep.subr.mxu0 0.0
  %1668 = vmatpush1.msra.mxu0 %v1639
  %1669 = vmatprep.subr.mxu0 0.0
  %1670 = vmatpush1.msra.mxu0 %v1640
  %1671 = vmatprep.subr.mxu0 0.0
  %1672 = vmatpush1.msra.mxu0 %v1641
  %1673 = vmatprep.subr.mxu0 0.0
  %1674 = vmatpush1.msra.mxu0 %v1642
  %1675 = vmatprep.subr.mxu0 0.0
  %1676 = vmatpush1.msra.mxu0 %v1643
  %1677 = vmatprep.subr.mxu0 0.0
  %1678 = vmatpush1.msra.mxu0 %v1644
  %1679 = vmatprep.subr.mxu0 0.0
  %1680 = vmatpush1.msra.mxu0 %v1645
  %1681 = vmatprep.subr.mxu0 0.0
  %1682 = vmatpush1.msra.mxu0 %v1646
  %1683 = vmatprep.subr.mxu0 0.0
  %1684 = vmatpush1.msra.mxu0 %v1647
  %1685 = vmatprep.subr.mxu0 0.0
  %1686 = vmatpush1.msra.mxu0 %v1648
  %1687 = vmatprep.subr.mxu0 0.0
  %1688 = vmatpush1.msra.mxu0 %v1649
  %1689 = vmatprep.subr.mxu0 0.0
  %1690 = vmatpush1.msra.mxu0 %v1650
  %1691 = vmatprep.subr.mxu0 0.0
  %1692 = vmatpush1.msra.mxu0 %v1651
  %1693 = vmatprep.subr.mxu0 0.0
  %1694 = vmatpush1.msra.mxu0 %v1652
  %1695 = vmatprep.subr.mxu0 0.0
  %1696 = vmatpush1.msra.mxu0 %v1653
  %1697 = vmatprep.subr.mxu0 0.0
  %1698 = vmatpush1.msra.mxu0 %v1654
  %1699 = vmatprep.subr.mxu0 0.0
  %1700 = vmatpush1.msra.mxu0 %v1655
  %1701 = vmatprep.subr.mxu0 0.0
  %1702 = vmatpush1.msra.mxu0 0.0
  %1703 = vmatprep.subr.mxu0 0.0
  %1704 = vmatpush1.msra.mxu0 0.0
  %1705 = vmatprep.subr.mxu0 0.0
  %1706 = vmatpush1.msra.mxu0 0.0
  %1707 = vmatprep.subr.mxu0 0.0
  %1708 = vmatpush1.msra.mxu0 0.0
  %1709 = vmatprep.subr.mxu0 0.0
  %1710 = vmatpush1.msra.mxu0 0.0
  %1711 = vmatprep.subr.mxu0 0.0
  %1712 = vmatpush1.msra.mxu0 0.0
  %1713 = vmatprep.subr.mxu0 0.0
  %1714 = vmatpush1.msra.mxu0 0.0
  %1715 = vmatprep.subr.mxu0 0.0
  %1716 = vmatpush1.msra.mxu0 0.0
  %1717 = vmatprep.subr.mxu0 0.0
  %1718 = vmatpush1.msra.mxu0 0.0
  %1719 = vmatprep.subr.mxu0 0.0
  %1720 = vmatpush1.msra.mxu0 0.0
  %1721 = vmatprep.subr.mxu0 0.0
  %1722 = vmatpush1.msra.mxu0 0.0
  %1723 = vmatprep.subr.mxu0 0.0
  %1724 = vmatpush1.msra.mxu0 0.0
  %1725 = vmatprep.mubr.f32.mxu0 %v1563
  %1726 = vmatmul.mubr.f32.gmra.mrb[0].mxu0 %v1535
  %v1727 = vpop.f32.mrb[0].mxu0
  %v1728 = vadd.f32 %v1660, %v1727
  %v1729 = vpop.f32.mrb[0].mxu0
  %1730 = vdwg.mxu0
  %v1731 = vtanh.pop %v1728
  %v1732 = vsub.f32 0.0, %v1731
  %v1733 = vmul.f32 %v1732, 1.442695
  %v1734 = vpow.pop %v1733
  %v1735 = vld [vmem:[%s4] sm:$0xff]
  %v1736 = vsub.f32 %v1735, %v1632
  %v1737 = vmul.f32 %v1736, %v1734
  %v1738 = vadd.f32 %v1731, 0.0
  %1740 = vrot.lane.b32.xlu0 %v1632, 118
  %v1741 = vpop.permute.xlu0 %1740
  %v1743 = vsub.f32 %v1737, %v1741
  %1745 = vrot.lane.b32.xlu0 %v1734, 118
  %v1746 = vpop.permute.xlu0 %1745
  %v1748 = vmul.f32 %v1743, %v1746
  %1750 = vrot.lane.b32.xlu0 %v1731, 118
  %v1751 = vpop.permute.xlu0 %1750
  %v1753 = vadd.f32 %v1738, %v1751
  %1754 = vrot.lane.b32.xlu0 %v1632, 108
  %v1755 = vpop.permute.xlu0 %1754
  %v1757 = vsub.f32 %v1748, %v1755
  %1758 = vrot.lane.b32.xlu0 %v1734, 108
  %v1759 = vpop.permute.xlu0 %1758
  %v1761 = vmul.f32 %v1757, %v1759
  %1762 = vrot.lane.b32.xlu0 %v1731, 108
  %v1763 = vpop.permute.xlu0 %1762
  %v1765 = vadd.f32 %v1753, %v1763
  %1766 = vrot.lane.b32.xlu0 %v1632, 98
  %v1767 = vpop.permute.xlu0 %1766
  %v1769 = vsub.f32 %v1761, %v1767
  %1770 = vrot.lane.b32.xlu0 %v1734, 98
  %v1771 = vpop.permute.xlu0 %1770
  %v1773 = vmul.f32 %v1769, %v1771
  %1774 = vrot.lane.b32.xlu0 %v1731, 98
  %v1775 = vpop.permute.xlu0 %1774
  %v1777 = vadd.f32 %v1765, %v1775
  %1778 = vrot.lane.b32.xlu0 %v1632, 88
  %v1779 = vpop.permute.xlu0 %1778
  %v1781 = vsub.f32 %v1773, %v1779
  %1782 = vrot.lane.b32.xlu0 %v1734, 88
  %v1783 = vpop.permute.xlu0 %1782
  %v1785 = vmul.f32 %v1781, %v1783
  %1786 = vrot.lane.b32.xlu0 %v1731, 88
  %v1787 = vpop.permute.xlu0 %1786
  %v1789 = vadd.f32 %v1777, %v1787
  %v1790 = vmul.f32 %v1785, 0.5
  %v1791 = vmul.f32 %v1790, %v1785
  %v1792 = vadd.f32 %v1791, %v1789
  %v1793 = vld [vmem:[%s16] sm:$0xff]
  %v1794 = vld [vmem:[%s16 + $0x8] sm:$0x3]
  %vm1795 = vcmask 80896
  %v1797 = vsel %vm1795, %v1792, 0
  %vm1799 = vcmask 1041408
  %v1801 = vsel %vm1799, %v1794, 0
  %1803 = vmatprep.subr.mxu0 0.0
  %1804 = vmatpush1.msra.mxu0 %v1793
  %1805 = vmatprep.subr.mxu0 0.0
  %1806 = vmatpush1.msra.mxu0 %v1801
  %1807 = vmatprep.subr.mxu0 0.0
  %1808 = vmatpush1.msra.mxu0 0.0
  %1809 = vmatprep.subr.mxu0 0.0
  %1810 = vmatpush1.msra.mxu0 0.0
  %1811 = vmatprep.subr.mxu0 0.0
  %1812 = vmatpush1.msra.mxu0 0.0
  %1813 = vmatprep.subr.mxu0 0.0
  %1814 = vmatpush1.msra.mxu0 0.0
  %1815 = vmatprep.subr.mxu0 0.0
  %1816 = vmatpush1.msra.mxu0 0.0
  %1817 = vmatprep.subr.mxu0 0.0
  %1818 = vmatpush1.msra.mxu0 0.0
  %1819 = vmatprep.subr.mxu0 0.0
  %1820 = vmatpush1.msra.mxu0 0.0
  %1821 = vmatprep.subr.mxu0 0.0
  %1822 = vmatpush1.msra.mxu0 0.0
  %1823 = vmatprep.subr.mxu0 0.0
  %1824 = vmatpush1.msra.mxu0 0.0
  %1825 = vmatprep.subr.mxu0 0.0
  %1826 = vmatpush1.msra.mxu0 0.0
  %1827 = vmatprep.subr.mxu0 0.0
  %1828 = vmatpush1.msra.mxu0 0.0
  %1829 = vmatprep.subr.mxu0 0.0
  %1830 = vmatpush1.msra.mxu0 0.0
  %1831 = vmatprep.subr.mxu0 0.0
  %1832 = vmatpush1.msra.mxu0 0.0
  %1833 = vmatprep.subr.mxu0 0.0
  %1834 = vmatpush1.msra.mxu0 0.0
  %1835 = vmatprep.subr.mxu0 0.0
  %1836 = vmatpush1.msra.mxu0 0.0
  %1837 = vmatprep.subr.mxu0 0.0
  %1838 = vmatpush1.msra.mxu0 0.0
  %1839 = vmatprep.subr.mxu0 0.0
  %1840 = vmatpush1.msra.mxu0 0.0
  %1841 = vmatprep.subr.mxu0 0.0
  %1842 = vmatpush1.msra.mxu0 0.0
  %1843 = vmatprep.subr.mxu0 0.0
  %1844 = vmatpush1.msra.mxu0 0.0
  %1845 = vmatprep.subr.mxu0 0.0
  %1846 = vmatpush1.msra.mxu0 0.0
  %1847 = vmatprep.subr.mxu0 0.0
  %1848 = vmatpush1.msra.mxu0 0.0
  %1849 = vmatprep.subr.mxu0 0.0
  %1850 = vmatpush1.msra.mxu0 0.0
  %1851 = vmatprep.subr.mxu0 0.0
  %1852 = vmatpush1.msra.mxu0 0.0
  %1853 = vmatprep.subr.mxu0 0.0
  %1854 = vmatpush1.msra.mxu0 0.0
  %1855 = vmatprep.subr.mxu0 0.0
  %1856 = vmatpush1.msra.mxu0 0.0
  %1857 = vmatprep.subr.mxu0 0.0
  %1858 = vmatpush1.msra.mxu0 0.0
  %1859 = vmatprep.subr.mxu0 0.0
  %1860 = vmatpush1.msra.mxu0 0.0
  %1861 = vmatprep.subr.mxu0 0.0
  %1862 = vmatpush1.msra.mxu0 0.0
  %1863 = vmatprep.subr.mxu0 0.0
  %1864 = vmatpush1.msra.mxu0 0.0
  %1865 = vmatprep.subr.mxu0 0.0
  %1866 = vmatpush1.msra.mxu0 0.0
  %1867 = vmatprep.mubr.f32.mxu0 0.0
  %1868 = vmatmul.mubr.f32.gmra.mrb[0].mxu0 %v1797
  %v1869 = vpop.f32.mrb[0].mxu0
  %v1870 = vadd.f32 0.0, %v1869
  %v1871 = vpop.f32.mrb[0].mxu0
  %1872 = vdwg.mxu0
  %v1873 = vsub.f32 %v934, %v1870
  %1874 = vst [vmem:[%s17] sm:$0xff] %v1873
  // Predicated region
  $region70: #{unfolding_flow_forward.1} parent=0 // pred_check
    _
  $region71: #{unfolding_flow_forward.1} parent=0 // pred_check_branch
    %1876 = sbr.rel (0) target = $region73
  $region72: #{unfolding_flow_forward.1} parent=0 // pred_region
    _
  $region73: #{unfolding_flow_forward.1} parent=0 // pred_fallthru
    _
  // Predicated region
  $region74: #{unfolding_flow_forward.1} parent=0 // pred_check
    _
  $region75: #{unfolding_flow_forward.1} parent=0 // pred_check_branch
    %1878 = sbr.rel (0) target = $region77
  $region76: #{unfolding_flow_forward.1} parent=0 // pred_region
    _
  $region77: #{unfolding_flow_forward.1} parent=0 // pred_fallthru
    _

</llo_original>
